<compile_context>
chip_gen: v5e
topology: v5e:2x2
jax: 0.10.0
libtpu: 0.0.40
codegen_flags: <defaults>
</compile_context>

<pallas_src>
import math
import functools

import jax
import jax.numpy as jnp
from jax import lax
from jax.experimental import pallas as pl
from jax.experimental.pallas import tpu as pltpu


def _layer_norm(x, gamma, beta, eps):
    # PyTorch nn.LayerNorm: normalize over last dim, biased variance; affine broadcasts.
    mean = jnp.mean(x, axis=-1, keepdims=True)
    var = jnp.mean((x - mean) ** 2, axis=-1, keepdims=True)
    return (x - mean) * lax.rsqrt(var + eps) * gamma + beta


def transformer_kernel(x_ref,
                       wq_ref, bq_ref, wk_ref, bk_ref, wv_ref, bv_ref,
                       wo_ref, bo_ref,
                       g1_ref, be1_ref,
                       gf_ref, bef_ref, w1_ref, b1_ref, w2_ref, b2_ref,
                       g2_ref, be2_ref,
                       o_ref,
                       *, head_num, n_encoder, compute_dtype):
    """All n_encoder (weight-shared) encoder layers for one (block_b, N, D) batch block."""
    block_b, N, D = x_ref.shape
    M = block_b * N
    H = head_num
    sub = D // H
    cd = compute_dtype
    f32 = jnp.float32

    # ---- Shared weights: loaded & (optionally) cast ONCE; reused by every layer. ----
    wq = wq_ref[...].astype(cd)   # (D, D)  (1/sqrt(sub) already folded in host-side)
    wk = wk_ref[...].astype(cd)   # (D, D)
    wv = wv_ref[...].astype(cd)   # (D, D)
    wo = wo_ref[...].astype(cd)   # (D, D)
    w1 = w1_ref[...].astype(cd)   # (D, F)
    w2 = w2_ref[...].astype(cd)   # (F, D)
    bq = bq_ref[...]; bk = bk_ref[...]; bv = bv_ref[...]           # (1, D) f32
    bo = bo_ref[...]; b1 = b1_ref[...]; b2 = b2_ref[...]           # (1, D) / (1, F)
    g1 = g1_ref[...]; be1 = be1_ref[...]                            # (1, D)
    gf = gf_ref[...]; bef = bef_ref[...]
    g2 = g2_ref[...]; be2 = be2_ref[...]

    def mm(a, b):
        # Lane-dense MXU matmul; operands optionally bf16, accumulation always f32.
        return jnp.dot(a.astype(cd), b.astype(cd), preferred_element_type=f32)

    def encoder_layer(_, x):                                        # x: (M, D) f32
        # -------- MultiHead_SelfAttention --------
        q = mm(x, wq) + bq                                          # (M, D)  scale folded in
        k = mm(x, wk) + bk
        v = mm(x, wv) + bv

        # Per-head scores / softmax / context (the K=sub contraction is per-head by
        # definition).  Head views are static lane slices of the lane-dense q/k/v.
        # TODO(synk): tile over keys with online softmax (flash-style) once N is large
        # enough that the per-head (block_b, N, N) score tensor pressures VMEM (v7x).
        ctx_heads = []
        for h in range(H):
            lo, hi = h * sub, (h + 1) * sub
            qh = q[:, lo:hi].reshape(block_b, N, sub)
            kh = k[:, lo:hi].reshape(block_b, N, sub)
            vh = v[:, lo:hi].reshape(block_b, N, sub)
            s = jnp.einsum('bqs,bks->bqk', qh.astype(cd), kh.astype(cd),
                           preferred_element_type=f32)              # (block_b, N, N)
            s = s - jnp.max(s, axis=-1, keepdims=True)               # stable softmax
            e = jnp.exp(s)
            p = e / jnp.sum(e, axis=-1, keepdims=True)               # exact normalization
            c = jnp.einsum('bqk,bks->bqs', p.astype(cd), vh.astype(cd),
                           preferred_element_type=f32)               # (block_b, N, sub)
            ctx_heads.append(c.reshape(M, sub))
        # == transpose(1,2).contiguous().view(B, N, D) in the reference module.
        ctx = jnp.concatenate(ctx_heads, axis=-1)                    # (M, D), lane-dense
        mha = mm(ctx, wo) + bo                                       # single K=D projection

        # ---- Lyer_norm 1: relu(LayerNorm_1e-5(mha + x)); dropout = identity ----
        a = jnp.maximum(_layer_norm(mha + x, g1, be1, 1e-5), 0.0)

        # ---- FeedForward: w2(relu(w1(LayerNorm_1e-6(a)) + b1)) + b2 ----
        ln = _layer_norm(a, gf, bef, 1e-6)
        inter = jnp.maximum(mm(ln, w1) + b1, 0.0)                    # (M, F)
        ffn = mm(inter, w2) + b2                                     # (M, D)

        # ---- Lyer_norm 2: relu(LayerNorm_1e-5(ffn + a)); dropout = identity ----
        return jnp.maximum(_layer_norm(ffn + a, g2, be2, 1e-5), 0.0)

    x0 = x_ref[...].reshape(M, D).astype(f32)
    out = lax.fori_loop(0, n_encoder, encoder_layer, x0)             # non-unrolled
    o_ref[...] = out.reshape(block_b, N, D).astype(o_ref.dtype)


def init_params(key, input_dim, head_num, ff_dim):
    """Deterministic synthetic parameters (one layer reused for all 6 encoders,
    matching nn.ModuleList([self.encoder_layer] * n) weight sharing)."""
    D, F = input_dim, ff_dim
    ks = jax.random.split(key, 8)

    def xavier(k, fan_in, fan_out):
        lim = math.sqrt(6.0 / (fan_in + fan_out))
        return jax.random.uniform(k, (fan_in, fan_out), jnp.float32, -lim, lim)

    return dict(
        wq=xavier(ks[0], D, D), bq=jnp.zeros((1, D), jnp.float32),
        wk=xavier(ks[1], D, D), bk=jnp.zeros((1, D), jnp.float32),
        wv=xavier(ks[2], D, D), bv=jnp.zeros((1, D), jnp.float32),
        wo=xavier(ks[3], D, D),
        bo=0.01 * jax.random.normal(ks[4], (1, D), jnp.float32),
        g1=jnp.ones((1, D), jnp.float32), be1=jnp.zeros((1, D), jnp.float32),
        gf=jnp.ones((1, D), jnp.float32), bef=jnp.zeros((1, D), jnp.float32),
        w1=xavier(ks[5], D, F),
        b1=0.01 * jax.random.normal(ks[6], (1, F), jnp.float32),
        w2=xavier(ks[7], F, D), b2=jnp.zeros((1, D), jnp.float32),
        g2=jnp.ones((1, D), jnp.float32), be2=jnp.zeros((1, D), jnp.float32),
    )


def my_transformer_xyz(x, params, head_num, n_encoder=6, block_b=None,
                       compute_dtype=jnp.float32):
    B, N, D = x.shape
    assert D % head_num == 0
    sub = D // head_num
    scale = 1.0 / math.sqrt(float(sub))

    # Host-side, ONE-TIME: fold the 1/sqrt(sub) softmax scale into the Q projection
    # (the previous kernel re-did this multiply on every grid step).
    param_list = [
        params["wq"] * scale, params["bq"] * scale,
        params["wk"], params["bk"], params["wv"], params["bv"],
        params["wo"], params["bo"],
        params["g1"], params["be1"],
        params["gf"], params["bef"],
        params["w1"], params["b1"], params["w2"], params["b2"],
        params["g2"], params["be2"],
    ]

    if block_b is None:
        # Rows per matmul M = block_b * N: aim for ~128 (fill the MXU row pipeline)
        # while keeping >= 2 grid steps so both v7x TensorCores get work.
        limit = B if B == 1 else B // 2
        good = [d for d in range(1, limit + 1) if B % d == 0 and d * N <= 128]
        block_b = max(good) if good else 1
    assert B % block_b == 0
    grid = (B // block_b,)

    kernel = functools.partial(transformer_kernel, head_num=head_num,
                               n_encoder=n_encoder, compute_dtype=compute_dtype)

    def replicated(p):
        nd = p.ndim
        # Whole (small) parameter resident in VMEM; its block index never changes across
        # the grid, so it is fetched once and reused by every grid step / layer.
        # TODO(synk): pipeline_mode=pl.Buffered(1) would drop the weight double-buffer.
        return pl.BlockSpec(p.shape, lambda b, _nd=nd: (0,) * _nd)

    in_specs = [pl.BlockSpec((block_b, N, D), lambda b: (b, 0, 0))]
    in_specs += [replicated(p) for p in param_list]
    out_specs = pl.BlockSpec((block_b, N, D), lambda b: (b, 0, 0))

    # Rough VMEM budget: double-buffered weights + in/out blocks + live activations.
    # Only raise the scoped limit when the 32 MiB default would be tight.
    F = params["w1"].shape[1]
    param_bytes = sum(int(p.size) * p.dtype.itemsize for p in param_list)
    act_bytes = block_b * N * (4 * D + F + head_num * N) * 4 * 3
    est = 2 * param_bytes + 4 * block_b * N * D * 4 + act_bytes
    ckw = dict(dimension_semantics=("parallel",))
    if est > (32 << 20):
        ckw["vmem_limit_bytes"] = int(min(est * 2, 128 << 20))

    fn = pl.pallas_call(
        kernel,
        out_shape=jax.ShapeDtypeStruct((B, N, D), jnp.float32),
        grid_spec=pltpu.PrefetchScalarGridSpec(
            num_scalar_prefetch=0,
            grid=grid,
            in_specs=in_specs,
            out_specs=out_specs,
        ),
        compiler_params=pltpu.CompilerParams(**ckw),
    )
    # Single fused call: all n_encoder weight-shared encoder layers run inside the kernel.
    return fn(x, *param_list)


# ---------------- pure-JAX reference (for sanity check) ----------------
def _ref_layer(x, p, head_num):
    B, N, D = x.shape
    sub = D // head_num

    def mha(x):
        q = x @ p["wq"] + p["bq"]
        k = x @ p["wk"] + p["bk"]
        v = x @ p["wv"] + p["bv"]
        q = q.reshape(B, N, head_num, sub).transpose(0, 2, 1, 3)
        k = k.reshape(B, N, head_num, sub).transpose(0, 2, 1, 3)
        v = v.reshape(B, N, head_num, sub).transpose(0, 2, 1, 3)
        s = jnp.einsum("bhnd,bhmd->bhnm", q, k) / math.sqrt(sub)
        a = jax.nn.softmax(s, axis=-1)
        o = jnp.einsum("bhnm,bhmd->bhnd", a, v).transpose(0, 2, 1, 3).reshape(B, N, D)
        return o @ p["wo"] + p["bo"]

    def ln(x, g, b, eps):
        m = jnp.mean(x, -1, keepdims=True)
        v = jnp.mean((x - m) ** 2, -1, keepdims=True)
        return (x - m) / jnp.sqrt(v + eps) * g + b

    a = jax.nn.relu(ln(mha(x) + x, p["g1"], p["be1"], 1e-5))
    f = jax.nn.relu(ln(a, p["gf"], p["bef"], 1e-6) @ p["w1"] + p["b1"]) @ p["w2"] + p["b2"]
    return jax.nn.relu(ln(f + a, p["g2"], p["be2"], 1e-5))


def _reference(x, params, head_num, n_encoder=6):
    inter = x
    for _ in range(n_encoder):
        inter = _ref_layer(inter, params, head_num)
    return inter


if __name__ == "__main__":
    B, N, D, H, FF = 2, 8, 32, 4, 64   # small shapes: seq=8, hidden=32, 4 heads, ff=64
    key = jax.random.PRNGKey(0)
    kx, kp = jax.random.split(key)
    x = jax.random.normal(kx, (B, N, D), jnp.float32)
    params = init_params(kp, D, H, FF)

    # f32 matmul-operand path (parity target).
    out = jax.block_until_ready(my_transformer_xyz(x, params, head_num=H, n_encoder=6))

    with jax.default_matmul_precision("float32"):
        ref = jax.block_until_ready(_reference(x, params, head_num=H, n_encoder=6))

    assert out.shape == (B, N, D)
    assert bool(jnp.all(jnp.isfinite(out)))
    err = float(jnp.max(jnp.abs(out - ref)))
    assert err < 5e-2, f"f32-path max abs error too large: {err}"

    # bf16 matmul-operand path (MXU-native on v6e/v7x; f32 accumulation & statistics).
    out_bf16 = jax.block_until_ready(
        my_transformer_xyz(x, params, head_num=H, n_encoder=6,
                           compute_dtype=jnp.bfloat16))
    assert bool(jnp.all(jnp.isfinite(out_bf16)))
    err_bf16 = float(jnp.max(jnp.abs(out_bf16 - ref)))
    assert err_bf16 < 2.5e-1, f"bf16-path max abs error too large: {err_bf16}"

    print("KERNEL_OK")
</pallas_src>

<mosaic_0001>
module attributes {stable_mosaic.version = 11 : i64} {
  func.func @transformer_kernel(%arg0: i32, %arg1: memref<1x8x32xf32, #tpu.memory_space<vmem>>, %arg2: memref<32x32xf32, #tpu.memory_space<vmem>>, %arg3: memref<1x32xf32, #tpu.memory_space<vmem>>, %arg4: memref<32x32xf32, #tpu.memory_space<vmem>>, %arg5: memref<1x32xf32, #tpu.memory_space<vmem>>, %arg6: memref<32x32xf32, #tpu.memory_space<vmem>>, %arg7: memref<1x32xf32, #tpu.memory_space<vmem>>, %arg8: memref<32x32xf32, #tpu.memory_space<vmem>>, %arg9: memref<1x32xf32, #tpu.memory_space<vmem>>, %arg10: memref<1x32xf32, #tpu.memory_space<vmem>>, %arg11: memref<1x32xf32, #tpu.memory_space<vmem>>, %arg12: memref<1x32xf32, #tpu.memory_space<vmem>>, %arg13: memref<1x32xf32, #tpu.memory_space<vmem>>, %arg14: memref<32x64xf32, #tpu.memory_space<vmem>>, %arg15: memref<1x64xf32, #tpu.memory_space<vmem>>, %arg16: memref<64x32xf32, #tpu.memory_space<vmem>>, %arg17: memref<1x32xf32, #tpu.memory_space<vmem>>, %arg18: memref<1x32xf32, #tpu.memory_space<vmem>>, %arg19: memref<1x32xf32, #tpu.memory_space<vmem>>, %arg20: memref<1x8x32xf32, #tpu.memory_space<vmem>>) attributes {dimension_semantics = [#tpu.dimension_semantics<parallel>], iteration_bounds = array<i64: 2>, scalar_prefetch = 0 : i64, scratch_operands = 0 : i64, tpu.core_type = #tpu.core_type<tc>, window_params = [{transform_indices = @transform_0, window_bounds = array<i64: 1, 8, 32>}, {pipeline_mode = #tpu.pipeline_mode<synchronous>, transform_indices = @transform_1, window_bounds = array<i64: 32, 32>}, {pipeline_mode = #tpu.pipeline_mode<synchronous>, transform_indices = @transform_2, window_bounds = array<i64: 1, 32>}, {pipeline_mode = #tpu.pipeline_mode<synchronous>, transform_indices = @transform_3, window_bounds = array<i64: 32, 32>}, {pipeline_mode = #tpu.pipeline_mode<synchronous>, transform_indices = @transform_4, window_bounds = array<i64: 1, 32>}, {pipeline_mode = #tpu.pipeline_mode<synchronous>, transform_indices = @transform_5, window_bounds = array<i64: 32, 32>}, {pipeline_mode = #tpu.pipeline_mode<synchronous>, transform_indices = @transform_6, window_bounds = array<i64: 1, 32>}, {pipeline_mode = #tpu.pipeline_mode<synchronous>, transform_indices = @transform_7, window_bounds = array<i64: 32, 32>}, {pipeline_mode = #tpu.pipeline_mode<synchronous>, transform_indices = @transform_8, window_bounds = array<i64: 1, 32>}, {pipeline_mode = #tpu.pipeline_mode<synchronous>, transform_indices = @transform_9, window_bounds = array<i64: 1, 32>}, {pipeline_mode = #tpu.pipeline_mode<synchronous>, transform_indices = @transform_10, window_bounds = array<i64: 1, 32>}, {pipeline_mode = #tpu.pipeline_mode<synchronous>, transform_indices = @transform_11, window_bounds = array<i64: 1, 32>}, {pipeline_mode = #tpu.pipeline_mode<synchronous>, transform_indices = @transform_12, window_bounds = array<i64: 1, 32>}, {pipeline_mode = #tpu.pipeline_mode<synchronous>, transform_indices = @transform_13, window_bounds = array<i64: 32, 64>}, {pipeline_mode = #tpu.pipeline_mode<synchronous>, transform_indices = @transform_14, window_bounds = array<i64: 1, 64>}, {pipeline_mode = #tpu.pipeline_mode<synchronous>, transform_indices = @transform_15, window_bounds = array<i64: 64, 32>}, {pipeline_mode = #tpu.pipeline_mode<synchronous>, transform_indices = @transform_16, window_bounds = array<i64: 1, 32>}, {pipeline_mode = #tpu.pipeline_mode<synchronous>, transform_indices = @transform_17, window_bounds = array<i64: 1, 32>}, {pipeline_mode = #tpu.pipeline_mode<synchronous>, transform_indices = @transform_18, window_bounds = array<i64: 1, 32>}, {transform_indices = @transform_19, window_bounds = array<i64: 1, 8, 32>}]} {
    %c0 = arith.constant 0 : index
    %c0_0 = arith.constant 0 : index
    %0 = vector.load %arg2[%c0, %c0_0] : memref<32x32xf32, #tpu.memory_space<vmem>>, vector<32x32xf32>
    %c0_1 = arith.constant 0 : index
    %c0_2 = arith.constant 0 : index
    %1 = vector.load %arg4[%c0_1, %c0_2] : memref<32x32xf32, #tpu.memory_space<vmem>>, vector<32x32xf32>
    %c0_3 = arith.constant 0 : index
    %c0_4 = arith.constant 0 : index
    %2 = vector.load %arg6[%c0_3, %c0_4] : memref<32x32xf32, #tpu.memory_space<vmem>>, vector<32x32xf32>
    %c0_5 = arith.constant 0 : index
    %c0_6 = arith.constant 0 : index
    %3 = vector.load %arg8[%c0_5, %c0_6] : memref<32x32xf32, #tpu.memory_space<vmem>>, vector<32x32xf32>
    %c0_7 = arith.constant 0 : index
    %c0_8 = arith.constant 0 : index
    %4 = vector.load %arg14[%c0_7, %c0_8] : memref<32x64xf32, #tpu.memory_space<vmem>>, vector<32x64xf32>
    %c0_9 = arith.constant 0 : index
    %c0_10 = arith.constant 0 : index
    %5 = vector.load %arg16[%c0_9, %c0_10] : memref<64x32xf32, #tpu.memory_space<vmem>>, vector<64x32xf32>
    %c0_11 = arith.constant 0 : index
    %c0_12 = arith.constant 0 : index
    %6 = vector.load %arg3[%c0_11, %c0_12] : memref<1x32xf32, #tpu.memory_space<vmem>>, vector<1x32xf32>
    %c0_13 = arith.constant 0 : index
    %c0_14 = arith.constant 0 : index
    %7 = vector.load %arg5[%c0_13, %c0_14] : memref<1x32xf32, #tpu.memory_space<vmem>>, vector<1x32xf32>
    %c0_15 = arith.constant 0 : index
    %c0_16 = arith.constant 0 : index
    %8 = vector.load %arg7[%c0_15, %c0_16] : memref<1x32xf32, #tpu.memory_space<vmem>>, vector<1x32xf32>
    %c0_17 = arith.constant 0 : index
    %c0_18 = arith.constant 0 : index
    %9 = vector.load %arg9[%c0_17, %c0_18] : memref<1x32xf32, #tpu.memory_space<vmem>>, vector<1x32xf32>
    %c0_19 = arith.constant 0 : index
    %c0_20 = arith.constant 0 : index
    %10 = vector.load %arg15[%c0_19, %c0_20] : memref<1x64xf32, #tpu.memory_space<vmem>>, vector<1x64xf32>
    %c0_21 = arith.constant 0 : index
    %c0_22 = arith.constant 0 : index
    %11 = vector.load %arg17[%c0_21, %c0_22] : memref<1x32xf32, #tpu.memory_space<vmem>>, vector<1x32xf32>
    %c0_23 = arith.constant 0 : index
    %c0_24 = arith.constant 0 : index
    %12 = vector.load %arg10[%c0_23, %c0_24] : memref<1x32xf32, #tpu.memory_space<vmem>>, vector<1x32xf32>
    %c0_25 = arith.constant 0 : index
    %c0_26 = arith.constant 0 : index
    %13 = vector.load %arg11[%c0_25, %c0_26] : memref<1x32xf32, #tpu.memory_space<vmem>>, vector<1x32xf32>
    %c0_27 = arith.constant 0 : index
    %c0_28 = arith.constant 0 : index
    %14 = vector.load %arg12[%c0_27, %c0_28] : memref<1x32xf32, #tpu.memory_space<vmem>>, vector<1x32xf32>
    %c0_29 = arith.constant 0 : index
    %c0_30 = arith.constant 0 : index
    %15 = vector.load %arg13[%c0_29, %c0_30] : memref<1x32xf32, #tpu.memory_space<vmem>>, vector<1x32xf32>
    %c0_31 = arith.constant 0 : index
    %c0_32 = arith.constant 0 : index
    %16 = vector.load %arg18[%c0_31, %c0_32] : memref<1x32xf32, #tpu.memory_space<vmem>>, vector<1x32xf32>
    %c0_33 = arith.constant 0 : index
    %c0_34 = arith.constant 0 : index
    %17 = vector.load %arg19[%c0_33, %c0_34] : memref<1x32xf32, #tpu.memory_space<vmem>>, vector<1x32xf32>
    %c0_35 = arith.constant 0 : index
    %c0_36 = arith.constant 0 : index
    %c0_37 = arith.constant 0 : index
    %18 = vector.load %arg1[%c0_35, %c0_36, %c0_37] : memref<1x8x32xf32, #tpu.memory_space<vmem>>, vector<1x8x32xf32>
    %19 = vector.shape_cast %18 : vector<1x8x32xf32> to vector<8x32xf32>
    %c0_i32 = arith.constant 0 : i32
    %c6_i32 = arith.constant 6 : i32
    %20 = arith.addi %c0_i32, %c6_i32 : i32
    %c1_i32 = arith.constant 1 : i32
    %21 = scf.for %arg21 = %c0_i32 to %20 step %c1_i32 iter_args(%arg22 = %19) -> (vector<8x32xf32>)  : i32 {
      %cst = arith.constant dense<0.000000e+00> : vector<8x32xf32>
      %24 = tpu.matmul %arg22, %0, %cst {dimension_numbers = #tpu.dot_dimension_numbers<[1], [0], [0], [1], [0, 0, 1, 1], [], []>} : vector<8x32xf32>, vector<32x32xf32>, vector<8x32xf32> -> vector<8x32xf32>
      %25 = vector.broadcast %6 : vector<1x32xf32> to vector<8x32xf32>
      %26 = arith.addf %24, %25 : vector<8x32xf32>
      %cst_41 = arith.constant dense<0.000000e+00> : vector<8x32xf32>
      %27 = tpu.matmul %arg22, %1, %cst_41 {dimension_numbers = #tpu.dot_dimension_numbers<[1], [0], [0], [1], [0, 0, 1, 1], [], []>} : vector<8x32xf32>, vector<32x32xf32>, vector<8x32xf32> -> vector<8x32xf32>
      %28 = vector.broadcast %7 : vector<1x32xf32> to vector<8x32xf32>
      %29 = arith.addf %27, %28 : vector<8x32xf32>
      %cst_42 = arith.constant dense<0.000000e+00> : vector<8x32xf32>
      %30 = tpu.matmul %arg22, %2, %cst_42 {dimension_numbers = #tpu.dot_dimension_numbers<[1], [0], [0], [1], [0, 0, 1, 1], [], []>} : vector<8x32xf32>, vector<32x32xf32>, vector<8x32xf32> -> vector<8x32xf32>
      %31 = vector.broadcast %8 : vector<1x32xf32> to vector<8x32xf32>
      %32 = arith.addf %30, %31 : vector<8x32xf32>
      %33 = vector.extract_strided_slice %26 {offsets = [0, 0], sizes = [8, 8], strides = [1, 1]} : vector<8x32xf32> to vector<8x8xf32>
      %34 = vector.shape_cast %33 : vector<8x8xf32> to vector<1x8x8xf32>
      %35 = vector.extract_strided_slice %29 {offsets = [0, 0], sizes = [8, 8], strides = [1, 1]} : vector<8x32xf32> to vector<8x8xf32>
      %36 = vector.shape_cast %35 : vector<8x8xf32> to vector<1x8x8xf32>
      %37 = vector.extract_strided_slice %32 {offsets = [0, 0], sizes = [8, 8], strides = [1, 1]} : vector<8x32xf32> to vector<8x8xf32>
      %38 = vector.shape_cast %37 : vector<8x8xf32> to vector<1x8x8xf32>
      "tpu.trace_start"() <{level = 10 : i32, message = "bqs,bks->bqk"}> : () -> ()
      %cst_43 = arith.constant dense<0.000000e+00> : vector<1x8x8xf32>
      %39 = tpu.matmul %34, %36, %cst_43 {dimension_numbers = #tpu.dot_dimension_numbers<[2], [2], [1], [1], [0, 0, 0, 1, 1, 1], [0], [0]>} : vector<1x8x8xf32>, vector<1x8x8xf32>, vector<1x8x8xf32> -> vector<1x8x8xf32>
      "tpu.trace_stop"() : () -> ()
      %cst_44 = arith.constant dense<0xFF800000> : vector<1x8xf32>
      %40 = vector.multi_reduction <maximumf>, %39, %cst_44 [2] : vector<1x8x8xf32> to vector<1x8xf32>
      %41 = vector.shape_cast %40 : vector<1x8xf32> to vector<1x8x1xf32>
      %42 = vector.broadcast %41 : vector<1x8x1xf32> to vector<1x8x8xf32>
      %43 = arith.subf %39, %42 : vector<1x8x8xf32>
      %44 = math.exp %43 : vector<1x8x8xf32>
      %cst_45 = arith.constant dense<0.000000e+00> : vector<1x8xf32>
      %45 = vector.multi_reduction <add>, %44, %cst_45 [2] : vector<1x8x8xf32> to vector<1x8xf32>
      %46 = vector.shape_cast %45 : vector<1x8xf32> to vector<1x8x1xf32>
      %47 = vector.broadcast %46 : vector<1x8x1xf32> to vector<1x8x8xf32>
      %48 = arith.divf %44, %47 : vector<1x8x8xf32>
      "tpu.trace_start"() <{level = 10 : i32, message = "bqk,bks->bqs"}> : () -> ()
      %cst_46 = arith.constant dense<0.000000e+00> : vector<1x8x8xf32>
      %49 = tpu.matmul %48, %38, %cst_46 {dimension_numbers = #tpu.dot_dimension_numbers<[2], [1], [1], [2], [0, 0, 0, 1, 1, 2], [0], [0]>} : vector<1x8x8xf32>, vector<1x8x8xf32>, vector<1x8x8xf32> -> vector<1x8x8xf32>
      "tpu.trace_stop"() : () -> ()
      %50 = vector.shape_cast %49 : vector<1x8x8xf32> to vector<8x8xf32>
      %51 = vector.extract_strided_slice %26 {offsets = [0, 8], sizes = [8, 8], strides = [1, 1]} : vector<8x32xf32> to vector<8x8xf32>
      %52 = vector.shape_cast %51 : vector<8x8xf32> to vector<1x8x8xf32>
      %53 = vector.extract_strided_slice %29 {offsets = [0, 8], sizes = [8, 8], strides = [1, 1]} : vector<8x32xf32> to vector<8x8xf32>
      %54 = vector.shape_cast %53 : vector<8x8xf32> to vector<1x8x8xf32>
      %55 = vector.extract_strided_slice %32 {offsets = [0, 8], sizes = [8, 8], strides = [1, 1]} : vector<8x32xf32> to vector<8x8xf32>
      %56 = vector.shape_cast %55 : vector<8x8xf32> to vector<1x8x8xf32>
      "tpu.trace_start"() <{level = 10 : i32, message = "bqs,bks->bqk"}> : () -> ()
      %cst_47 = arith.constant dense<0.000000e+00> : vector<1x8x8xf32>
      %57 = tpu.matmul %52, %54, %cst_47 {dimension_numbers = #tpu.dot_dimension_numbers<[2], [2], [1], [1], [0, 0, 0, 1, 1, 1], [0], [0]>} : vector<1x8x8xf32>, vector<1x8x8xf32>, vector<1x8x8xf32> -> vector<1x8x8xf32>
      "tpu.trace_stop"() : () -> ()
      %cst_48 = arith.constant dense<0xFF800000> : vector<1x8xf32>
      %58 = vector.multi_reduction <maximumf>, %57, %cst_48 [2] : vector<1x8x8xf32> to vector<1x8xf32>
      %59 = vector.shape_cast %58 : vector<1x8xf32> to vector<1x8x1xf32>
      %60 = vector.broadcast %59 : vector<1x8x1xf32> to vector<1x8x8xf32>
      %61 = arith.subf %57, %60 : vector<1x8x8xf32>
      %62 = math.exp %61 : vector<1x8x8xf32>
      %cst_49 = arith.constant dense<0.000000e+00> : vector<1x8xf32>
      %63 = vector.multi_reduction <add>, %62, %cst_49 [2] : vector<1x8x8xf32> to vector<1x8xf32>
      %64 = vector.shape_cast %63 : vector<1x8xf32> to vector<1x8x1xf32>
      %65 = vector.broadcast %64 : vector<1x8x1xf32> to vector<1x8x8xf32>
      %66 = arith.divf %62, %65 : vector<1x8x8xf32>
      "tpu.trace_start"() <{level = 10 : i32, message = "bqk,bks->bqs"}> : () -> ()
      %cst_50 = arith.constant dense<0.000000e+00> : vector<1x8x8xf32>
      %67 = tpu.matmul %66, %56, %cst_50 {dimension_numbers = #tpu.dot_dimension_numbers<[2], [1], [1], [2], [0, 0, 0, 1, 1, 2], [0], [0]>} : vector<1x8x8xf32>, vector<1x8x8xf32>, vector<1x8x8xf32> -> vector<1x8x8xf32>
      "tpu.trace_stop"() : () -> ()
      %68 = vector.shape_cast %67 : vector<1x8x8xf32> to vector<8x8xf32>
      %69 = vector.extract_strided_slice %26 {offsets = [0, 16], sizes = [8, 8], strides = [1, 1]} : vector<8x32xf32> to vector<8x8xf32>
      %70 = vector.shape_cast %69 : vector<8x8xf32> to vector<1x8x8xf32>
      %71 = vector.extract_strided_slice %29 {offsets = [0, 16], sizes = [8, 8], strides = [1, 1]} : vector<8x32xf32> to vector<8x8xf32>
      %72 = vector.shape_cast %71 : vector<8x8xf32> to vector<1x8x8xf32>
      %73 = vector.extract_strided_slice %32 {offsets = [0, 16], sizes = [8, 8], strides = [1, 1]} : vector<8x32xf32> to vector<8x8xf32>
      %74 = vector.shape_cast %73 : vector<8x8xf32> to vector<1x8x8xf32>
      "tpu.trace_start"() <{level = 10 : i32, message = "bqs,bks->bqk"}> : () -> ()
      %cst_51 = arith.constant dense<0.000000e+00> : vector<1x8x8xf32>
      %75 = tpu.matmul %70, %72, %cst_51 {dimension_numbers = #tpu.dot_dimension_numbers<[2], [2], [1], [1], [0, 0, 0, 1, 1, 1], [0], [0]>} : vector<1x8x8xf32>, vector<1x8x8xf32>, vector<1x8x8xf32> -> vector<1x8x8xf32>
      "tpu.trace_stop"() : () -> ()
      %cst_52 = arith.constant dense<0xFF800000> : vector<1x8xf32>
      %76 = vector.multi_reduction <maximumf>, %75, %cst_52 [2] : vector<1x8x8xf32> to vector<1x8xf32>
      %77 = vector.shape_cast %76 : vector<1x8xf32> to vector<1x8x1xf32>
      %78 = vector.broadcast %77 : vector<1x8x1xf32> to vector<1x8x8xf32>
      %79 = arith.subf %75, %78 : vector<1x8x8xf32>
      %80 = math.exp %79 : vector<1x8x8xf32>
      %cst_53 = arith.constant dense<0.000000e+00> : vector<1x8xf32>
      %81 = vector.multi_reduction <add>, %80, %cst_53 [2] : vector<1x8x8xf32> to vector<1x8xf32>
      %82 = vector.shape_cast %81 : vector<1x8xf32> to vector<1x8x1xf32>
      %83 = vector.broadcast %82 : vector<1x8x1xf32> to vector<1x8x8xf32>
      %84 = arith.divf %80, %83 : vector<1x8x8xf32>
      "tpu.trace_start"() <{level = 10 : i32, message = "bqk,bks->bqs"}> : () -> ()
      %cst_54 = arith.constant dense<0.000000e+00> : vector<1x8x8xf32>
      %85 = tpu.matmul %84, %74, %cst_54 {dimension_numbers = #tpu.dot_dimension_numbers<[2], [1], [1], [2], [0, 0, 0, 1, 1, 2], [0], [0]>} : vector<1x8x8xf32>, vector<1x8x8xf32>, vector<1x8x8xf32> -> vector<1x8x8xf32>
      "tpu.trace_stop"() : () -> ()
      %86 = vector.shape_cast %85 : vector<1x8x8xf32> to vector<8x8xf32>
      %87 = vector.extract_strided_slice %26 {offsets = [0, 24], sizes = [8, 8], strides = [1, 1]} : vector<8x32xf32> to vector<8x8xf32>
      %88 = vector.shape_cast %87 : vector<8x8xf32> to vector<1x8x8xf32>
      %89 = vector.extract_strided_slice %29 {offsets = [0, 24], sizes = [8, 8], strides = [1, 1]} : vector<8x32xf32> to vector<8x8xf32>
      %90 = vector.shape_cast %89 : vector<8x8xf32> to vector<1x8x8xf32>
      %91 = vector.extract_strided_slice %32 {offsets = [0, 24], sizes = [8, 8], strides = [1, 1]} : vector<8x32xf32> to vector<8x8xf32>
      %92 = vector.shape_cast %91 : vector<8x8xf32> to vector<1x8x8xf32>
      "tpu.trace_start"() <{level = 10 : i32, message = "bqs,bks->bqk"}> : () -> ()
      %cst_55 = arith.constant dense<0.000000e+00> : vector<1x8x8xf32>
      %93 = tpu.matmul %88, %90, %cst_55 {dimension_numbers = #tpu.dot_dimension_numbers<[2], [2], [1], [1], [0, 0, 0, 1, 1, 1], [0], [0]>} : vector<1x8x8xf32>, vector<1x8x8xf32>, vector<1x8x8xf32> -> vector<1x8x8xf32>
      "tpu.trace_stop"() : () -> ()
      %cst_56 = arith.constant dense<0xFF800000> : vector<1x8xf32>
      %94 = vector.multi_reduction <maximumf>, %93, %cst_56 [2] : vector<1x8x8xf32> to vector<1x8xf32>
      %95 = vector.shape_cast %94 : vector<1x8xf32> to vector<1x8x1xf32>
      %96 = vector.broadcast %95 : vector<1x8x1xf32> to vector<1x8x8xf32>
      %97 = arith.subf %93, %96 : vector<1x8x8xf32>
      %98 = math.exp %97 : vector<1x8x8xf32>
      %cst_57 = arith.constant dense<0.000000e+00> : vector<1x8xf32>
      %99 = vector.multi_reduction <add>, %98, %cst_57 [2] : vector<1x8x8xf32> to vector<1x8xf32>
      %100 = vector.shape_cast %99 : vector<1x8xf32> to vector<1x8x1xf32>
      %101 = vector.broadcast %100 : vector<1x8x1xf32> to vector<1x8x8xf32>
      %102 = arith.divf %98, %101 : vector<1x8x8xf32>
      "tpu.trace_start"() <{level = 10 : i32, message = "bqk,bks->bqs"}> : () -> ()
      %cst_58 = arith.constant dense<0.000000e+00> : vector<1x8x8xf32>
      %103 = tpu.matmul %102, %92, %cst_58 {dimension_numbers = #tpu.dot_dimension_numbers<[2], [1], [1], [2], [0, 0, 0, 1, 1, 2], [0], [0]>} : vector<1x8x8xf32>, vector<1x8x8xf32>, vector<1x8x8xf32> -> vector<1x8x8xf32>
      "tpu.trace_stop"() : () -> ()
      %104 = vector.shape_cast %103 : vector<1x8x8xf32> to vector<8x8xf32>
      %105 = tpu.concatenate %50, %68, %86, %104 in 1 : vector<8x8xf32>, vector<8x8xf32>, vector<8x8xf32>, vector<8x8xf32> -> vector<8x32xf32>
      %cst_59 = arith.constant dense<0.000000e+00> : vector<8x32xf32>
      %106 = tpu.matmul %105, %3, %cst_59 {dimension_numbers = #tpu.dot_dimension_numbers<[1], [0], [0], [1], [0, 0, 1, 1], [], []>} : vector<8x32xf32>, vector<32x32xf32>, vector<8x32xf32> -> vector<8x32xf32>
      %107 = vector.broadcast %9 : vector<1x32xf32> to vector<8x32xf32>
      %108 = arith.addf %106, %107 : vector<8x32xf32>
      %109 = arith.addf %108, %arg22 : vector<8x32xf32>
      %cst_60 = arith.constant dense<0.000000e+00> : vector<8xf32>
      %110 = vector.multi_reduction <add>, %109, %cst_60 [1] : vector<8x32xf32> to vector<8xf32>
      %111 = vector.shape_cast %110 : vector<8xf32> to vector<8x1xf32>
      %cst_61 = arith.constant 3.200000e+01 : f32
      %112 = vector.broadcast %cst_61 : f32 to vector<8x1xf32>
      %113 = arith.divf %111, %112 : vector<8x1xf32>
      %114 = vector.broadcast %113 : vector<8x1xf32> to vector<8x32xf32>
      %115 = arith.subf %109, %114 : vector<8x32xf32>
      %116 = arith.mulf %115, %115 : vector<8x32xf32>
      %cst_62 = arith.constant dense<0.000000e+00> : vector<8xf32>
      %117 = vector.multi_reduction <add>, %116, %cst_62 [1] : vector<8x32xf32> to vector<8xf32>
      %118 = vector.shape_cast %117 : vector<8xf32> to vector<8x1xf32>
      %cst_63 = arith.constant 3.200000e+01 : f32
      %119 = vector.broadcast %cst_63 : f32 to vector<8x1xf32>
      %120 = arith.divf %118, %119 : vector<8x1xf32>
      %121 = vector.broadcast %113 : vector<8x1xf32> to vector<8x32xf32>
      %122 = arith.subf %109, %121 : vector<8x32xf32>
      %cst_64 = arith.constant 9.99999974E-6 : f32
      %123 = vector.broadcast %cst_64 : f32 to vector<8x1xf32>
      %124 = arith.addf %120, %123 : vector<8x1xf32>
      %125 = math.rsqrt %124 : vector<8x1xf32>
      %126 = vector.broadcast %125 : vector<8x1xf32> to vector<8x32xf32>
      %127 = arith.mulf %122, %126 : vector<8x32xf32>
      %128 = vector.broadcast %12 : vector<1x32xf32> to vector<8x32xf32>
      %129 = arith.mulf %127, %128 : vector<8x32xf32>
      %130 = vector.broadcast %13 : vector<1x32xf32> to vector<8x32xf32>
      %131 = arith.addf %129, %130 : vector<8x32xf32>
      %cst_65 = arith.constant 0.000000e+00 : f32
      %132 = vector.broadcast %cst_65 : f32 to vector<8x32xf32>
      %133 = arith.maximumf %131, %132 : vector<8x32xf32>
      %cst_66 = arith.constant dense<0.000000e+00> : vector<8xf32>
      %134 = vector.multi_reduction <add>, %133, %cst_66 [1] : vector<8x32xf32> to vector<8xf32>
      %135 = vector.shape_cast %134 : vector<8xf32> to vector<8x1xf32>
      %cst_67 = arith.constant 3.200000e+01 : f32
      %136 = vector.broadcast %cst_67 : f32 to vector<8x1xf32>
      %137 = arith.divf %135, %136 : vector<8x1xf32>
      %138 = vector.broadcast %137 : vector<8x1xf32> to vector<8x32xf32>
      %139 = arith.subf %133, %138 : vector<8x32xf32>
      %140 = arith.mulf %139, %139 : vector<8x32xf32>
      %cst_68 = arith.constant dense<0.000000e+00> : vector<8xf32>
      %141 = vector.multi_reduction <add>, %140, %cst_68 [1] : vector<8x32xf32> to vector<8xf32>
      %142 = vector.shape_cast %141 : vector<8xf32> to vector<8x1xf32>
      %cst_69 = arith.constant 3.200000e+01 : f32
      %143 = vector.broadcast %cst_69 : f32 to vector<8x1xf32>
      %144 = arith.divf %142, %143 : vector<8x1xf32>
      %145 = vector.broadcast %137 : vector<8x1xf32> to vector<8x32xf32>
      %146 = arith.subf %133, %145 : vector<8x32xf32>
      %cst_70 = arith.constant 9.99999997E-7 : f32
      %147 = vector.broadcast %cst_70 : f32 to vector<8x1xf32>
      %148 = arith.addf %144, %147 : vector<8x1xf32>
      %149 = math.rsqrt %148 : vector<8x1xf32>
      %150 = vector.broadcast %149 : vector<8x1xf32> to vector<8x32xf32>
      %151 = arith.mulf %146, %150 : vector<8x32xf32>
      %152 = vector.broadcast %14 : vector<1x32xf32> to vector<8x32xf32>
      %153 = arith.mulf %151, %152 : vector<8x32xf32>
      %154 = vector.broadcast %15 : vector<1x32xf32> to vector<8x32xf32>
      %155 = arith.addf %153, %154 : vector<8x32xf32>
      %cst_71 = arith.constant dense<0.000000e+00> : vector<8x64xf32>
      %156 = tpu.matmul %155, %4, %cst_71 {dimension_numbers = #tpu.dot_dimension_numbers<[1], [0], [0], [1], [0, 0, 1, 1], [], []>} : vector<8x32xf32>, vector<32x64xf32>, vector<8x64xf32> -> vector<8x64xf32>
      %157 = vector.broadcast %10 : vector<1x64xf32> to vector<8x64xf32>
      %158 = arith.addf %156, %157 : vector<8x64xf32>
      %cst_72 = arith.constant 0.000000e+00 : f32
      %159 = vector.broadcast %cst_72 : f32 to vector<8x64xf32>
      %160 = arith.maximumf %158, %159 : vector<8x64xf32>
      %cst_73 = arith.constant dense<0.000000e+00> : vector<8x32xf32>
      %161 = tpu.matmul %160, %5, %cst_73 {dimension_numbers = #tpu.dot_dimension_numbers<[1], [0], [0], [1], [0, 0, 1, 1], [], []>} : vector<8x64xf32>, vector<64x32xf32>, vector<8x32xf32> -> vector<8x32xf32>
      %162 = vector.broadcast %11 : vector<1x32xf32> to vector<8x32xf32>
      %163 = arith.addf %161, %162 : vector<8x32xf32>
      %164 = arith.addf %163, %133 : vector<8x32xf32>
      %cst_74 = arith.constant dense<0.000000e+00> : vector<8xf32>
      %165 = vector.multi_reduction <add>, %164, %cst_74 [1] : vector<8x32xf32> to vector<8xf32>
      %166 = vector.shape_cast %165 : vector<8xf32> to vector<8x1xf32>
      %cst_75 = arith.constant 3.200000e+01 : f32
      %167 = vector.broadcast %cst_75 : f32 to vector<8x1xf32>
      %168 = arith.divf %166, %167 : vector<8x1xf32>
      %169 = vector.broadcast %168 : vector<8x1xf32> to vector<8x32xf32>
      %170 = arith.subf %164, %169 : vector<8x32xf32>
      %171 = arith.mulf %170, %170 : vector<8x32xf32>
      %cst_76 = arith.constant dense<0.000000e+00> : vector<8xf32>
      %172 = vector.multi_reduction <add>, %171, %cst_76 [1] : vector<8x32xf32> to vector<8xf32>
      %173 = vector.shape_cast %172 : vector<8xf32> to vector<8x1xf32>
      %cst_77 = arith.constant 3.200000e+01 : f32
      %174 = vector.broadcast %cst_77 : f32 to vector<8x1xf32>
      %175 = arith.divf %173, %174 : vector<8x1xf32>
      %176 = vector.broadcast %168 : vector<8x1xf32> to vector<8x32xf32>
      %177 = arith.subf %164, %176 : vector<8x32xf32>
      %cst_78 = arith.constant 9.99999974E-6 : f32
      %178 = vector.broadcast %cst_78 : f32 to vector<8x1xf32>
      %179 = arith.addf %175, %178 : vector<8x1xf32>
      %180 = math.rsqrt %179 : vector<8x1xf32>
      %181 = vector.broadcast %180 : vector<8x1xf32> to vector<8x32xf32>
      %182 = arith.mulf %177, %181 : vector<8x32xf32>
      %183 = vector.broadcast %16 : vector<1x32xf32> to vector<8x32xf32>
      %184 = arith.mulf %182, %183 : vector<8x32xf32>
      %185 = vector.broadcast %17 : vector<1x32xf32> to vector<8x32xf32>
      %186 = arith.addf %184, %185 : vector<8x32xf32>
      %cst_79 = arith.constant 0.000000e+00 : f32
      %187 = vector.broadcast %cst_79 : f32 to vector<8x32xf32>
      %188 = arith.maximumf %186, %187 : vector<8x32xf32>
      scf.yield %188 : vector<8x32xf32>
    }
    %22 = vector.shape_cast %21 : vector<8x32xf32> to vector<1x8x32xf32>
    %c0_38 = arith.constant 0 : index
    %c0_39 = arith.constant 0 : index
    %c0_40 = arith.constant 0 : index
    %23 = vector.load %arg20[%c0_38, %c0_39, %c0_40] : memref<1x8x32xf32, #tpu.memory_space<vmem>>, vector<1x8x32xf32>
    tpu.vector_store %arg20[%c0_38, %c0_39, %c0_40], %22 {strides = array<i32>} : memref<1x8x32xf32, #tpu.memory_space<vmem>>, vector<1x8x32xf32>,
    return
  }
  func.func @transform_0(%arg0: i32) -> (i32, i32, i32) {
    %c0_i32 = arith.constant 0 : i32
    %c0_i32_0 = arith.constant 0 : i32
    %c0_i32_1 = arith.constant 0 : i32
    return %arg0, %c0_i32, %c0_i32_0 : i32, i32, i32
  }
  func.func @transform_1(%arg0: i32) -> (i32, i32) {
    %c0_i32 = arith.constant 0 : i32
    %c0_i32_0 = arith.constant 0 : i32
    %c0_i32_1 = arith.constant 0 : i32
    return %c0_i32, %c0_i32_0 : i32, i32
  }
  func.func @transform_2(%arg0: i32) -> (i32, i32) {
    %c0_i32 = arith.constant 0 : i32
    %c0_i32_0 = arith.constant 0 : i32
    %c0_i32_1 = arith.constant 0 : i32
    return %c0_i32, %c0_i32_0 : i32, i32
  }
  func.func @transform_3(%arg0: i32) -> (i32, i32) {
    %c0_i32 = arith.constant 0 : i32
    %c0_i32_0 = arith.constant 0 : i32
    %c0_i32_1 = arith.constant 0 : i32
    return %c0_i32, %c0_i32_0 : i32, i32
  }
  func.func @transform_4(%arg0: i32) -> (i32, i32) {
    %c0_i32 = arith.constant 0 : i32
    %c0_i32_0 = arith.constant 0 : i32
    %c0_i32_1 = arith.constant 0 : i32
    return %c0_i32, %c0_i32_0 : i32, i32
  }
  func.func @transform_5(%arg0: i32) -> (i32, i32) {
    %c0_i32 = arith.constant 0 : i32
    %c0_i32_0 = arith.constant 0 : i32
    %c0_i32_1 = arith.constant 0 : i32
    return %c0_i32, %c0_i32_0 : i32, i32
  }
  func.func @transform_6(%arg0: i32) -> (i32, i32) {
    %c0_i32 = arith.constant 0 : i32
    %c0_i32_0 = arith.constant 0 : i32
    %c0_i32_1 = arith.constant 0 : i32
    return %c0_i32, %c0_i32_0 : i32, i32
  }
  func.func @transform_7(%arg0: i32) -> (i32, i32) {
    %c0_i32 = arith.constant 0 : i32
    %c0_i32_0 = arith.constant 0 : i32
    %c0_i32_1 = arith.constant 0 : i32
    return %c0_i32, %c0_i32_0 : i32, i32
  }
  func.func @transform_8(%arg0: i32) -> (i32, i32) {
    %c0_i32 = arith.constant 0 : i32
    %c0_i32_0 = arith.constant 0 : i32
    %c0_i32_1 = arith.constant 0 : i32
    return %c0_i32, %c0_i32_0 : i32, i32
  }
  func.func @transform_9(%arg0: i32) -> (i32, i32) {
    %c0_i32 = arith.constant 0 : i32
    %c0_i32_0 = arith.constant 0 : i32
    %c0_i32_1 = arith.constant 0 : i32
    return %c0_i32, %c0_i32_0 : i32, i32
  }
  func.func @transform_10(%arg0: i32) -> (i32, i32) {
    %c0_i32 = arith.constant 0 : i32
    %c0_i32_0 = arith.constant 0 : i32
    %c0_i32_1 = arith.constant 0 : i32
    return %c0_i32, %c0_i32_0 : i32, i32
  }
  func.func @transform_11(%arg0: i32) -> (i32, i32) {
    %c0_i32 = arith.constant 0 : i32
    %c0_i32_0 = arith.constant 0 : i32
    %c0_i32_1 = arith.constant 0 : i32
    return %c0_i32, %c0_i32_0 : i32, i32
  }
  func.func @transform_12(%arg0: i32) -> (i32, i32) {
    %c0_i32 = arith.constant 0 : i32
    %c0_i32_0 = arith.constant 0 : i32
    %c0_i32_1 = arith.constant 0 : i32
    return %c0_i32, %c0_i32_0 : i32, i32
  }
  func.func @transform_13(%arg0: i32) -> (i32, i32) {
    %c0_i32 = arith.constant 0 : i32
    %c0_i32_0 = arith.constant 0 : i32
    %c0_i32_1 = arith.constant 0 : i32
    return %c0_i32, %c0_i32_0 : i32, i32
  }
  func.func @transform_14(%arg0: i32) -> (i32, i32) {
    %c0_i32 = arith.constant 0 : i32
    %c0_i32_0 = arith.constant 0 : i32
    %c0_i32_1 = arith.constant 0 : i32
    return %c0_i32, %c0_i32_0 : i32, i32
  }
  func.func @transform_15(%arg0: i32) -> (i32, i32) {
    %c0_i32 = arith.constant 0 : i32
    %c0_i32_0 = arith.constant 0 : i32
    %c0_i32_1 = arith.constant 0 : i32
    return %c0_i32, %c0_i32_0 : i32, i32
  }
  func.func @transform_16(%arg0: i32) -> (i32, i32) {
    %c0_i32 = arith.constant 0 : i32
    %c0_i32_0 = arith.constant 0 : i32
    %c0_i32_1 = arith.constant 0 : i32
    return %c0_i32, %c0_i32_0 : i32, i32
  }
  func.func @transform_17(%arg0: i32) -> (i32, i32) {
    %c0_i32 = arith.constant 0 : i32
    %c0_i32_0 = arith.constant 0 : i32
    %c0_i32_1 = arith.constant 0 : i32
    return %c0_i32, %c0_i32_0 : i32, i32
  }
  func.func @transform_18(%arg0: i32) -> (i32, i32) {
    %c0_i32 = arith.constant 0 : i32
    %c0_i32_0 = arith.constant 0 : i32
    %c0_i32_1 = arith.constant 0 : i32
    return %c0_i32, %c0_i32_0 : i32, i32
  }
  func.func @transform_19(%arg0: i32) -> (i32, i32, i32) {
    %c0_i32 = arith.constant 0 : i32
    %c0_i32_0 = arith.constant 0 : i32
    %c0_i32_1 = arith.constant 0 : i32
    return %arg0, %c0_i32, %c0_i32_0 : i32, i32, i32
  }
}

</mosaic_0001>

<llo_original>
// kernel: tpu_custom_call.1
$region0: #{tpu_custom_call.1}
  #allocation0 [shape = 'u32[]', space=smem, size = 0x4, offset = 0x4, fixed_abs, tag = 'smem constant byte address 0x4 - core index']
  #allocation1 [shape = 'u32[72,128]{1,0:T(1,128)}', space=vmem, size = 0x9000, scoped, tag = 'internal scratch']
  %s0 = inlined_call_operand.hbm [shape: f32[2,8,32], index: 0, kind: input, shape index: {}]
  %s1 = inlined_call_operand.vmem [shape: f32[32,32], index: 1, kind: input, shape index: {}]
  %s2 = inlined_call_operand.vmem [shape: f32[1,32], index: 2, kind: input, shape index: {}]
  %s3 = inlined_call_operand.vmem [shape: f32[32,32], index: 3, kind: input, shape index: {}]
  %s4 = inlined_call_operand.vmem [shape: f32[1,32], index: 4, kind: input, shape index: {}]
  %s5 = inlined_call_operand.vmem [shape: f32[32,32], index: 5, kind: input, shape index: {}]
  %s6 = inlined_call_operand.vmem [shape: f32[1,32], index: 6, kind: input, shape index: {}]
  %s7 = inlined_call_operand.hbm [shape: f32[32,32], index: 7, kind: input, shape index: {}]
  %s8 = inlined_call_operand.vmem [shape: f32[1,32], index: 8, kind: input, shape index: {}]
  %s9 = inlined_call_operand.vmem [shape: f32[1,32], index: 9, kind: input, shape index: {}]
  %s10 = inlined_call_operand.vmem [shape: f32[1,32], index: 10, kind: input, shape index: {}]
  %s11 = inlined_call_operand.vmem [shape: f32[1,32], index: 11, kind: input, shape index: {}]
  %s12 = inlined_call_operand.vmem [shape: f32[1,32], index: 12, kind: input, shape index: {}]
  %s13 = inlined_call_operand.hbm [shape: f32[32,64], index: 13, kind: input, shape index: {}]
  %s14 = inlined_call_operand.vmem [shape: f32[1,64], index: 14, kind: input, shape index: {}]
  %s15 = inlined_call_operand.vmem [shape: f32[64,32], index: 15, kind: input, shape index: {}]
  %s16 = inlined_call_operand.vmem [shape: f32[1,32], index: 16, kind: input, shape index: {}]
  %s17 = inlined_call_operand.vmem [shape: f32[1,32], index: 17, kind: input, shape index: {}]
  %s18 = inlined_call_operand.vmem [shape: f32[1,32], index: 18, kind: input, shape index: {}]
  %s19 = inlined_call_operand.hbm [shape: f32[2,8,32], index: 19, kind: output, shape index: {}]
  %s20 = sld [smem:[#allocation0]]
  $region128: #{tpu_custom_call.1} parent=0
    _
  %s22 = ssub.s32 1, %s20
  %s23 = scalar_select 0, %s22, %s20
  $region1: #{tpu_custom_call.1} parent=0
    #allocation2 [shape = 'u8[8192]{0}', space=vmem, size = 0x2000, scoped, tag = 'input window, operand 0']
    #allocation3 [shape = 's32[2]{0}', space=sflag, size = 0x8, scoped, tag = 'scoped memory for tpu_custom_call.1']
    #allocation4 [shape = 's32[2]{0}', space=sflag, size = 0x8, scoped, tag = 'scoped memory for tpu_custom_call.1']
    #allocation5 [shape = 'u8[16384]{0}', space=vmem, size = 0x4000, scoped, tag = 'input window, operand 7, single buffered']
    #allocation6 [shape = 's32[1]{0}', space=sflag, size = 0x4, scoped, tag = 'scoped memory for tpu_custom_call.1']
    #allocation7 [shape = 'u8[16384]{0}', space=vmem, size = 0x4000, scoped, tag = 'input window, operand 13, single buffered']
    #allocation8 [shape = 'u8[8192]{0}', space=vmem, size = 0x2000, scoped, tag = 'output window, operand 0']
    %24 = vsyncpa [#allocation3], 0
    %s25 = scalar_lea.sflag [#allocation3], 1
    %26 = vsyncpa %s25, 0
    %27 = vsyncpa [#allocation6], 0
    %28 = vsyncpa [#allocation4], 0
    %s29 = scalar_lea.sflag [#allocation4], 1
    %30 = vsyncpa %s29, 0
    loop: start=0, step=1, limit=4
    $region2: #{tpu_custom_call.1} parent=1 // loop_pre_header
      _
    $region3: #{tpu_custom_call.1} parent=1 // loop_header
      %s32 = sphi 0, %s36
      %p33 = scmp.ge.s32.totalorder %s32, 4
      %s42 = sphi 0, %s44
      %s45 = sphi 0, %s42
      %s46 = sphi 0, %s45
      %s62 = sphi 0, %s46
      %s66 = sphi 0, %s66
      %s68 = sphi 0, %s66
      %s69 = sphi 0, %s68
      %s83 = sphi 0, %s69
      %s87 = sphi 0, %s87
      %s89 = sphi 0, %s87
      %s90 = sphi 0, %s89
      %s104 = sphi 0, %s90
      %s108 = sphi 0, %s108
      %s110 = sphi 0, %s108
      %s111 = sphi 0, %s110
      %s125 = sphi 0, %s111
      %s129 = sphi 0, %s129
      %s131 = sphi 0, %s129
      %s132 = sphi 0, %s131
      %s146 = sphi 0, %s132
      %s150 = sphi 0, %s150
      %s152 = sphi 0, %s150
      %s153 = sphi 0, %s152
      %s167 = sphi 0, %s153
      %s171 = sphi 0, %s171
      %s173 = sphi 0, %s171
      %s174 = sphi 0, %s173
      %s188 = sphi 0, %s174
      %s192 = sphi 0, %s192
      %s194 = sphi 0, %s192
      %s195 = sphi 0, %s194
      %s209 = sphi 0, %s195
      %s213 = sphi 0, %s213
      %s215 = sphi 0, %s213
      %s216 = sphi 0, %s215
      %s230 = sphi 0, %s216
      %s234 = sphi 0, %s234
      %s236 = sphi 0, %s234
      %s237 = sphi 0, %s236
      %s251 = sphi 0, %s237
      %s255 = sphi 0, %s255
      %s257 = sphi 0, %s255
      %s258 = sphi 0, %s257
      %s272 = sphi 0, %s258
      %s276 = sphi 0, %s276
      %s278 = sphi 0, %s276
      %s279 = sphi 0, %s278
      %s293 = sphi 0, %s279
      %s297 = sphi 0, %s297
      %s299 = sphi 0, %s297
      %s300 = sphi 0, %s299
      %s314 = sphi 0, %s300
      %s318 = sphi 0, %s318
      %s320 = sphi 0, %s318
      %s321 = sphi 0, %s320
      %s335 = sphi 0, %s321
      %s339 = sphi 0, %s339
      %s341 = sphi 0, %s339
      %s342 = sphi 0, %s341
      %s356 = sphi 0, %s342
      %s360 = sphi 0, %s360
      %s362 = sphi 0, %s360
      %s363 = sphi 0, %s362
      %s377 = sphi 0, %s363
      %s381 = sphi 0, %s381
      %s383 = sphi 0, %s381
      %s384 = sphi 0, %s383
      %s398 = sphi 0, %s384
      %s402 = sphi 0, %s402
      %s404 = sphi 0, %s402
      %s405 = sphi 0, %s404
      %s419 = sphi 0, %s405
      %s423 = sphi 0, %s423
      %s425 = sphi 0, %s423
      %s426 = sphi 0, %s425
      %s440 = sphi 0, %s426
      %s446 = sphi 0, %s448
      %s449 = sphi 0, %s446
      %s450 = sphi 0, %s449
      %s466 = sphi 0, %s450
    $region4: #{tpu_custom_call.1} parent=1 // loop_header_branch
      %35 = sbr.rel (%p33) target = $region8
    $region5: #{tpu_custom_call.1} parent=1 // loop_body
      %s37 = ssub.s32 %s32, 1
      %s38 = ssub.s32 %s32, 2
      %s39 = sadd.s32 %s32, 1
      %s40 = ssub.s32 %s32, %s39
      %p41 = scmp.eq.s32.totalorder %s40, 0
      %s43 = sadd.s32 %s42, 1
      %s44 = scalar_select %p41, %s42, %s43
      %p47 = pneg %p41
      %p48 = scmp.eq.s32.totalorder %s32, 1
      %p49 = por %p47, %p48
      %p50 = scmp.ne.s32.totalorder %s42, %s45
      %p51 = scmp.eq.s32.totalorder %s32, 0
      %p52 = por %p50, %p51
      %p53 = scmp.ne.s32.totalorder %s42, %s45
      %p54 = scmp.eq.s32.totalorder %s37, 1
      %p55 = por %p53, %p54
      %p56 = scmp.ne.s32.totalorder %s45, %s46
      %p57 = scmp.eq.s32.totalorder %s37, 0
      %p58 = por %p56, %p57
      %p59 = scmp.ne.s32.totalorder %s45, %s46
      %p60 = scmp.eq.s32.totalorder %s38, 1
      %p61 = por %p59, %p60
      %p63 = scmp.ne.s32.totalorder %s46, %s62
      %p64 = scmp.eq.s32.totalorder %s38, 0
      %p65 = por %p63, %p64
      %s67 = sadd.s32 %s66, 1
      %p70 = scmp.eq.s32.totalorder %s32, 1
      %p71 = scmp.ne.s32.totalorder %s66, %s68
      %p72 = scmp.eq.s32.totalorder %s32, 0
      %p73 = por %p71, %p72
      %p74 = scmp.ne.s32.totalorder %s66, %s68
      %p75 = scmp.eq.s32.totalorder %s37, 1
      %p76 = por %p74, %p75
      %p77 = scmp.ne.s32.totalorder %s68, %s69
      %p78 = scmp.eq.s32.totalorder %s37, 0
      %p79 = por %p77, %p78
      %p80 = scmp.ne.s32.totalorder %s68, %s69
      %p81 = scmp.eq.s32.totalorder %s38, 1
      %p82 = por %p80, %p81
      %p84 = scmp.ne.s32.totalorder %s69, %s83
      %p85 = scmp.eq.s32.totalorder %s38, 0
      %p86 = por %p84, %p85
      %s88 = sadd.s32 %s87, 1
      %p91 = scmp.eq.s32.totalorder %s32, 1
      %p92 = scmp.ne.s32.totalorder %s87, %s89
      %p93 = scmp.eq.s32.totalorder %s32, 0
      %p94 = por %p92, %p93
      %p95 = scmp.ne.s32.totalorder %s87, %s89
      %p96 = scmp.eq.s32.totalorder %s37, 1
      %p97 = por %p95, %p96
      %p98 = scmp.ne.s32.totalorder %s89, %s90
      %p99 = scmp.eq.s32.totalorder %s37, 0
      %p100 = por %p98, %p99
      %p101 = scmp.ne.s32.totalorder %s89, %s90
      %p102 = scmp.eq.s32.totalorder %s38, 1
      %p103 = por %p101, %p102
      %p105 = scmp.ne.s32.totalorder %s90, %s104
      %p106 = scmp.eq.s32.totalorder %s38, 0
      %p107 = por %p105, %p106
      %s109 = sadd.s32 %s108, 1
      %p112 = scmp.eq.s32.totalorder %s32, 1
      %p113 = scmp.ne.s32.totalorder %s108, %s110
      %p114 = scmp.eq.s32.totalorder %s32, 0
      %p115 = por %p113, %p114
      %p116 = scmp.ne.s32.totalorder %s108, %s110
      %p117 = scmp.eq.s32.totalorder %s37, 1
      %p118 = por %p116, %p117
      %p119 = scmp.ne.s32.totalorder %s110, %s111
      %p120 = scmp.eq.s32.totalorder %s37, 0
      %p121 = por %p119, %p120
      %p122 = scmp.ne.s32.totalorder %s110, %s111
      %p123 = scmp.eq.s32.totalorder %s38, 1
      %p124 = por %p122, %p123
      %p126 = scmp.ne.s32.totalorder %s111, %s125
      %p127 = scmp.eq.s32.totalorder %s38, 0
      %p128 = por %p126, %p127
      %s130 = sadd.s32 %s129, 1
      %p133 = scmp.eq.s32.totalorder %s32, 1
      %p134 = scmp.ne.s32.totalorder %s129, %s131
      %p135 = scmp.eq.s32.totalorder %s32, 0
      %p136 = por %p134, %p135
      %p137 = scmp.ne.s32.totalorder %s129, %s131
      %p138 = scmp.eq.s32.totalorder %s37, 1
      %p139 = por %p137, %p138
      %p140 = scmp.ne.s32.totalorder %s131, %s132
      %p141 = scmp.eq.s32.totalorder %s37, 0
      %p142 = por %p140, %p141
      %p143 = scmp.ne.s32.totalorder %s131, %s132
      %p144 = scmp.eq.s32.totalorder %s38, 1
      %p145 = por %p143, %p144
      %p147 = scmp.ne.s32.totalorder %s132, %s146
      %p148 = scmp.eq.s32.totalorder %s38, 0
      %p149 = por %p147, %p148
      %s151 = sadd.s32 %s150, 1
      %p154 = scmp.eq.s32.totalorder %s32, 1
      %p155 = scmp.ne.s32.totalorder %s150, %s152
      %p156 = scmp.eq.s32.totalorder %s32, 0
      %p157 = por %p155, %p156
      %p158 = scmp.ne.s32.totalorder %s150, %s152
      %p159 = scmp.eq.s32.totalorder %s37, 1
      %p160 = por %p158, %p159
      %p161 = scmp.ne.s32.totalorder %s152, %s153
      %p162 = scmp.eq.s32.totalorder %s37, 0
      %p163 = por %p161, %p162
      %p164 = scmp.ne.s32.totalorder %s152, %s153
      %p165 = scmp.eq.s32.totalorder %s38, 1
      %p166 = por %p164, %p165
      %p168 = scmp.ne.s32.totalorder %s153, %s167
      %p169 = scmp.eq.s32.totalorder %s38, 0
      %p170 = por %p168, %p169
      %s172 = sadd.s32 %s171, 1
      %p175 = scmp.eq.s32.totalorder %s32, 1
      %p176 = scmp.ne.s32.totalorder %s171, %s173
      %p177 = scmp.eq.s32.totalorder %s32, 0
      %p178 = por %p176, %p177
      %p179 = scmp.ne.s32.totalorder %s171, %s173
      %p180 = scmp.eq.s32.totalorder %s37, 1
      %p181 = por %p179, %p180
      %p182 = scmp.ne.s32.totalorder %s173, %s174
      %p183 = scmp.eq.s32.totalorder %s37, 0
      %p184 = por %p182, %p183
      %p185 = scmp.ne.s32.totalorder %s173, %s174
      %p186 = scmp.eq.s32.totalorder %s38, 1
      %p187 = por %p185, %p186
      %p189 = scmp.ne.s32.totalorder %s174, %s188
      %p190 = scmp.eq.s32.totalorder %s38, 0
      %p191 = por %p189, %p190
      %s193 = sadd.s32 %s192, 1
      %p196 = scmp.eq.s32.totalorder %s32, 1
      %p197 = scmp.ne.s32.totalorder %s192, %s194
      %p198 = scmp.eq.s32.totalorder %s32, 0
      %p199 = por %p197, %p198
      %p200 = scmp.ne.s32.totalorder %s192, %s194
      %p201 = scmp.eq.s32.totalorder %s37, 1
      %p202 = por %p200, %p201
      %p203 = scmp.ne.s32.totalorder %s194, %s195
      %p204 = scmp.eq.s32.totalorder %s37, 0
      %p205 = por %p203, %p204
      %p206 = scmp.ne.s32.totalorder %s194, %s195
      %p207 = scmp.eq.s32.totalorder %s38, 1
      %p208 = por %p206, %p207
      %p210 = scmp.ne.s32.totalorder %s195, %s209
      %p211 = scmp.eq.s32.totalorder %s38, 0
      %p212 = por %p210, %p211
      %s214 = sadd.s32 %s213, 1
      %p217 = scmp.eq.s32.totalorder %s32, 1
      %p218 = scmp.ne.s32.totalorder %s213, %s215
      %p219 = scmp.eq.s32.totalorder %s32, 0
      %p220 = por %p218, %p219
      %p221 = scmp.ne.s32.totalorder %s213, %s215
      %p222 = scmp.eq.s32.totalorder %s37, 1
      %p223 = por %p221, %p222
      %p224 = scmp.ne.s32.totalorder %s215, %s216
      %p225 = scmp.eq.s32.totalorder %s37, 0
      %p226 = por %p224, %p225
      %p227 = scmp.ne.s32.totalorder %s215, %s216
      %p228 = scmp.eq.s32.totalorder %s38, 1
      %p229 = por %p227, %p228
      %p231 = scmp.ne.s32.totalorder %s216, %s230
      %p232 = scmp.eq.s32.totalorder %s38, 0
      %p233 = por %p231, %p232
      %s235 = sadd.s32 %s234, 1
      %p238 = scmp.eq.s32.totalorder %s32, 1
      %p239 = scmp.ne.s32.totalorder %s234, %s236
      %p240 = scmp.eq.s32.totalorder %s32, 0
      %p241 = por %p239, %p240
      %p242 = scmp.ne.s32.totalorder %s234, %s236
      %p243 = scmp.eq.s32.totalorder %s37, 1
      %p244 = por %p242, %p243
      %p245 = scmp.ne.s32.totalorder %s236, %s237
      %p246 = scmp.eq.s32.totalorder %s37, 0
      %p247 = por %p245, %p246
      %p248 = scmp.ne.s32.totalorder %s236, %s237
      %p249 = scmp.eq.s32.totalorder %s38, 1
      %p250 = por %p248, %p249
      %p252 = scmp.ne.s32.totalorder %s237, %s251
      %p253 = scmp.eq.s32.totalorder %s38, 0
      %p254 = por %p252, %p253
      %s256 = sadd.s32 %s255, 1
      %p259 = scmp.eq.s32.totalorder %s32, 1
      %p260 = scmp.ne.s32.totalorder %s255, %s257
      %p261 = scmp.eq.s32.totalorder %s32, 0
      %p262 = por %p260, %p261
      %p263 = scmp.ne.s32.totalorder %s255, %s257
      %p264 = scmp.eq.s32.totalorder %s37, 1
      %p265 = por %p263, %p264
      %p266 = scmp.ne.s32.totalorder %s257, %s258
      %p267 = scmp.eq.s32.totalorder %s37, 0
      %p268 = por %p266, %p267
      %p269 = scmp.ne.s32.totalorder %s257, %s258
      %p270 = scmp.eq.s32.totalorder %s38, 1
      %p271 = por %p269, %p270
      %p273 = scmp.ne.s32.totalorder %s258, %s272
      %p274 = scmp.eq.s32.totalorder %s38, 0
      %p275 = por %p273, %p274
      %s277 = sadd.s32 %s276, 1
      %p280 = scmp.eq.s32.totalorder %s32, 1
      %p281 = scmp.ne.s32.totalorder %s276, %s278
      %p282 = scmp.eq.s32.totalorder %s32, 0
      %p283 = por %p281, %p282
      %p284 = scmp.ne.s32.totalorder %s276, %s278
      %p285 = scmp.eq.s32.totalorder %s37, 1
      %p286 = por %p284, %p285
      %p287 = scmp.ne.s32.totalorder %s278, %s279
      %p288 = scmp.eq.s32.totalorder %s37, 0
      %p289 = por %p287, %p288
      %p290 = scmp.ne.s32.totalorder %s278, %s279
      %p291 = scmp.eq.s32.totalorder %s38, 1
      %p292 = por %p290, %p291
      %p294 = scmp.ne.s32.totalorder %s279, %s293
      %p295 = scmp.eq.s32.totalorder %s38, 0
      %p296 = por %p294, %p295
      %s298 = sadd.s32 %s297, 1
      %p301 = scmp.eq.s32.totalorder %s32, 1
      %p302 = scmp.ne.s32.totalorder %s297, %s299
      %p303 = scmp.eq.s32.totalorder %s32, 0
      %p304 = por %p302, %p303
      %p305 = scmp.ne.s32.totalorder %s297, %s299
      %p306 = scmp.eq.s32.totalorder %s37, 1
      %p307 = por %p305, %p306
      %p308 = scmp.ne.s32.totalorder %s299, %s300
      %p309 = scmp.eq.s32.totalorder %s37, 0
      %p310 = por %p308, %p309
      %p311 = scmp.ne.s32.totalorder %s299, %s300
      %p312 = scmp.eq.s32.totalorder %s38, 1
      %p313 = por %p311, %p312
      %p315 = scmp.ne.s32.totalorder %s300, %s314
      %p316 = scmp.eq.s32.totalorder %s38, 0
      %p317 = por %p315, %p316
      %s319 = sadd.s32 %s318, 1
      %p322 = scmp.eq.s32.totalorder %s32, 1
      %p323 = scmp.ne.s32.totalorder %s318, %s320
      %p324 = scmp.eq.s32.totalorder %s32, 0
      %p325 = por %p323, %p324
      %p326 = scmp.ne.s32.totalorder %s318, %s320
      %p327 = scmp.eq.s32.totalorder %s37, 1
      %p328 = por %p326, %p327
      %p329 = scmp.ne.s32.totalorder %s320, %s321
      %p330 = scmp.eq.s32.totalorder %s37, 0
      %p331 = por %p329, %p330
      %p332 = scmp.ne.s32.totalorder %s320, %s321
      %p333 = scmp.eq.s32.totalorder %s38, 1
      %p334 = por %p332, %p333
      %p336 = scmp.ne.s32.totalorder %s321, %s335
      %p337 = scmp.eq.s32.totalorder %s38, 0
      %p338 = por %p336, %p337
      %s340 = sadd.s32 %s339, 1
      %p343 = scmp.eq.s32.totalorder %s32, 1
      %p344 = scmp.ne.s32.totalorder %s339, %s341
      %p345 = scmp.eq.s32.totalorder %s32, 0
      %p346 = por %p344, %p345
      %p347 = scmp.ne.s32.totalorder %s339, %s341
      %p348 = scmp.eq.s32.totalorder %s37, 1
      %p349 = por %p347, %p348
      %p350 = scmp.ne.s32.totalorder %s341, %s342
      %p351 = scmp.eq.s32.totalorder %s37, 0
      %p352 = por %p350, %p351
      %p353 = scmp.ne.s32.totalorder %s341, %s342
      %p354 = scmp.eq.s32.totalorder %s38, 1
      %p355 = por %p353, %p354
      %p357 = scmp.ne.s32.totalorder %s342, %s356
      %p358 = scmp.eq.s32.totalorder %s38, 0
      %p359 = por %p357, %p358
      %s361 = sadd.s32 %s360, 1
      %p364 = scmp.eq.s32.totalorder %s32, 1
      %p365 = scmp.ne.s32.totalorder %s360, %s362
      %p366 = scmp.eq.s32.totalorder %s32, 0
      %p367 = por %p365, %p366
      %p368 = scmp.ne.s32.totalorder %s360, %s362
      %p369 = scmp.eq.s32.totalorder %s37, 1
      %p370 = por %p368, %p369
      %p371 = scmp.ne.s32.totalorder %s362, %s363
      %p372 = scmp.eq.s32.totalorder %s37, 0
      %p373 = por %p371, %p372
      %p374 = scmp.ne.s32.totalorder %s362, %s363
      %p375 = scmp.eq.s32.totalorder %s38, 1
      %p376 = por %p374, %p375
      %p378 = scmp.ne.s32.totalorder %s363, %s377
      %p379 = scmp.eq.s32.totalorder %s38, 0
      %p380 = por %p378, %p379
      %s382 = sadd.s32 %s381, 1
      %p385 = scmp.eq.s32.totalorder %s32, 1
      %p386 = scmp.ne.s32.totalorder %s381, %s383
      %p387 = scmp.eq.s32.totalorder %s32, 0
      %p388 = por %p386, %p387
      %p389 = scmp.ne.s32.totalorder %s381, %s383
      %p390 = scmp.eq.s32.totalorder %s37, 1
      %p391 = por %p389, %p390
      %p392 = scmp.ne.s32.totalorder %s383, %s384
      %p393 = scmp.eq.s32.totalorder %s37, 0
      %p394 = por %p392, %p393
      %p395 = scmp.ne.s32.totalorder %s383, %s384
      %p396 = scmp.eq.s32.totalorder %s38, 1
      %p397 = por %p395, %p396
      %p399 = scmp.ne.s32.totalorder %s384, %s398
      %p400 = scmp.eq.s32.totalorder %s38, 0
      %p401 = por %p399, %p400
      %s403 = sadd.s32 %s402, 1
      %p406 = scmp.eq.s32.totalorder %s32, 1
      %p407 = scmp.ne.s32.totalorder %s402, %s404
      %p408 = scmp.eq.s32.totalorder %s32, 0
      %p409 = por %p407, %p408
      %p410 = scmp.ne.s32.totalorder %s402, %s404
      %p411 = scmp.eq.s32.totalorder %s37, 1
      %p412 = por %p410, %p411
      %p413 = scmp.ne.s32.totalorder %s404, %s405
      %p414 = scmp.eq.s32.totalorder %s37, 0
      %p415 = por %p413, %p414
      %p416 = scmp.ne.s32.totalorder %s404, %s405
      %p417 = scmp.eq.s32.totalorder %s38, 1
      %p418 = por %p416, %p417
      %p420 = scmp.ne.s32.totalorder %s405, %s419
      %p421 = scmp.eq.s32.totalorder %s38, 0
      %p422 = por %p420, %p421
      %s424 = sadd.s32 %s423, 1
      %p427 = scmp.eq.s32.totalorder %s32, 1
      %p428 = scmp.ne.s32.totalorder %s423, %s425
      %p429 = scmp.eq.s32.totalorder %s32, 0
      %p430 = por %p428, %p429
      %p431 = scmp.ne.s32.totalorder %s423, %s425
      %p432 = scmp.eq.s32.totalorder %s37, 1
      %p433 = por %p431, %p432
      %p434 = scmp.ne.s32.totalorder %s425, %s426
      %p435 = scmp.eq.s32.totalorder %s37, 0
      %p436 = por %p434, %p435
      %p437 = scmp.ne.s32.totalorder %s425, %s426
      %p438 = scmp.eq.s32.totalorder %s38, 1
      %p439 = por %p437, %p438
      %p441 = scmp.ne.s32.totalorder %s426, %s440
      %p442 = scmp.eq.s32.totalorder %s38, 0
      %p443 = por %p441, %p442
      %s444 = ssub.s32 %s32, %s39
      %p445 = scmp.eq.s32.totalorder %s444, 0
      %s447 = sadd.s32 %s446, 1
      %s448 = scalar_select %p445, %s446, %s447
      %p451 = pneg %p445
      %p452 = scmp.eq.s32.totalorder %s32, 1
      %p453 = por %p451, %p452
      %p454 = scmp.ne.s32.totalorder %s446, %s449
      %p455 = scmp.eq.s32.totalorder %s32, 0
      %p456 = por %p454, %p455
      %p457 = scmp.ne.s32.totalorder %s446, %s449
      %p458 = scmp.eq.s32.totalorder %s37, 1
      %p459 = por %p457, %p458
      %p460 = scmp.ne.s32.totalorder %s449, %s450
      %p461 = scmp.eq.s32.totalorder %s37, 0
      %p462 = por %p460, %p461
      %p463 = scmp.ne.s32.totalorder %s449, %s450
      %p464 = scmp.eq.s32.totalorder %s38, 1
      %p465 = por %p463, %p464
      %p467 = scmp.ne.s32.totalorder %s450, %s466
      %p468 = scmp.eq.s32.totalorder %s38, 0
      %p469 = por %p467, %p468
      %p470 = scmp.le.s32.totalorder 1, %s32
      %p471 = scmp.lt.s32.totalorder %s32, 3
      %p472 = pnand %p470, %p471
      %p473 = pneg %p472
      // Predicated region
      $region9: #{tpu_custom_call.1} parent=5 // pred_check
        _
      $region10: #{tpu_custom_call.1} parent=5 // pred_check_branch
        %475 = sbr.rel (%p472) target = $region12
      $region11: #{tpu_custom_call.1} parent=5 // pred_region
        %s476 = ssub.s32 %s32, 1
        // Predicated region
        $region13: #{tpu_custom_call.1} parent=11 // pred_check
          %p477 = pneg %p79
        $region14: #{tpu_custom_call.1} parent=11 // pred_check_branch
          %479 = sbr.rel (%p477) target = $region16
        $region15: #{tpu_custom_call.1} parent=11 // pred_region
          _
        $region16: #{tpu_custom_call.1} parent=11 // pred_fallthru
          _
        // Predicated region
        $region17: #{tpu_custom_call.1} parent=11 // pred_check
          %p480 = pneg %p100
        $region18: #{tpu_custom_call.1} parent=11 // pred_check_branch
          %482 = sbr.rel (%p480) target = $region20
        $region19: #{tpu_custom_call.1} parent=11 // pred_region
          _
        $region20: #{tpu_custom_call.1} parent=11 // pred_fallthru
          _
        // Predicated region
        $region21: #{tpu_custom_call.1} parent=11 // pred_check
          %p483 = pneg %p121
        $region22: #{tpu_custom_call.1} parent=11 // pred_check_branch
          %485 = sbr.rel (%p483) target = $region24
        $region23: #{tpu_custom_call.1} parent=11 // pred_region
          _
        $region24: #{tpu_custom_call.1} parent=11 // pred_fallthru
          _
        // Predicated region
        $region25: #{tpu_custom_call.1} parent=11 // pred_check
          %p486 = pneg %p142
        $region26: #{tpu_custom_call.1} parent=11 // pred_check_branch
          %488 = sbr.rel (%p486) target = $region28
        $region27: #{tpu_custom_call.1} parent=11 // pred_region
          _
        $region28: #{tpu_custom_call.1} parent=11 // pred_fallthru
          _
        // Predicated region
        $region29: #{tpu_custom_call.1} parent=11 // pred_check
          %p489 = pneg %p163
        $region30: #{tpu_custom_call.1} parent=11 // pred_check_branch
          %491 = sbr.rel (%p489) target = $region32
        $region31: #{tpu_custom_call.1} parent=11 // pred_region
          _
        $region32: #{tpu_custom_call.1} parent=11 // pred_fallthru
          _
        // Predicated region
        $region33: #{tpu_custom_call.1} parent=11 // pred_check
          %p492 = pneg %p184
        $region34: #{tpu_custom_call.1} parent=11 // pred_check_branch
          %494 = sbr.rel (%p492) target = $region36
        $region35: #{tpu_custom_call.1} parent=11 // pred_region
          _
        $region36: #{tpu_custom_call.1} parent=11 // pred_fallthru
          _
        // Predicated region
        $region37: #{tpu_custom_call.1} parent=11 // pred_check
          %p495 = pneg %p205
        $region38: #{tpu_custom_call.1} parent=11 // pred_check_branch
          %497 = sbr.rel (%p495) target = $region40
        $region39: #{tpu_custom_call.1} parent=11 // pred_region
          %499 = vsyncadd [#allocation6], 0
          %s500 = sshll.u32 %s7, 4
          %s501 = int_to_ptr.hbm [resolvable:$true] %s500
          %s502 = sshll.u32 [#allocation5], 4
          %s503 = int_to_ptr.vmem [resolvable:$true] %s502
          %508 = dma.hbm_to_vmem [thread:$0]  %s501, 512, %s503, [#allocation6], 128, 128, 8
        $region40: #{tpu_custom_call.1} parent=11 // pred_fallthru
          _
        // Predicated region
        $region41: #{tpu_custom_call.1} parent=11 // pred_check
          %p509 = pneg %p226
        $region42: #{tpu_custom_call.1} parent=11 // pred_check_branch
          %511 = sbr.rel (%p509) target = $region44
        $region43: #{tpu_custom_call.1} parent=11 // pred_region
          _
        $region44: #{tpu_custom_call.1} parent=11 // pred_fallthru
          _
        // Predicated region
        $region45: #{tpu_custom_call.1} parent=11 // pred_check
          %p512 = pneg %p247
        $region46: #{tpu_custom_call.1} parent=11 // pred_check_branch
          %514 = sbr.rel (%p512) target = $region48
        $region47: #{tpu_custom_call.1} parent=11 // pred_region
          _
        $region48: #{tpu_custom_call.1} parent=11 // pred_fallthru
          _
        // Predicated region
        $region49: #{tpu_custom_call.1} parent=11 // pred_check
          %p515 = pneg %p268
        $region50: #{tpu_custom_call.1} parent=11 // pred_check_branch
          %517 = sbr.rel (%p515) target = $region52
        $region51: #{tpu_custom_call.1} parent=11 // pred_region
          _
        $region52: #{tpu_custom_call.1} parent=11 // pred_fallthru
          _
        // Predicated region
        $region53: #{tpu_custom_call.1} parent=11 // pred_check
          %p518 = pneg %p289
        $region54: #{tpu_custom_call.1} parent=11 // pred_check_branch
          %520 = sbr.rel (%p518) target = $region56
        $region55: #{tpu_custom_call.1} parent=11 // pred_region
          _
        $region56: #{tpu_custom_call.1} parent=11 // pred_fallthru
          _
        // Predicated region
        $region57: #{tpu_custom_call.1} parent=11 // pred_check
          %p521 = pneg %p310
        $region58: #{tpu_custom_call.1} parent=11 // pred_check_branch
          %523 = sbr.rel (%p521) target = $region60
        $region59: #{tpu_custom_call.1} parent=11 // pred_region
          _
        $region60: #{tpu_custom_call.1} parent=11 // pred_fallthru
          _
        // Predicated region
        $region61: #{tpu_custom_call.1} parent=11 // pred_check
          %p524 = pneg %p331
        $region62: #{tpu_custom_call.1} parent=11 // pred_check_branch
          %526 = sbr.rel (%p524) target = $region64
        $region63: #{tpu_custom_call.1} parent=11 // pred_region
          %528 = vsyncadd [#allocation6], 0
          %s529 = sshll.u32 %s13, 4
          %s530 = int_to_ptr.hbm [resolvable:$true] %s529
          %s531 = sshll.u32 [#allocation7], 4
          %s532 = int_to_ptr.vmem [resolvable:$true] %s531
          %537 = dma.hbm_to_vmem [thread:$0]  %s530, 512, %s532, [#allocation6], 128, 128, 8
        $region64: #{tpu_custom_call.1} parent=11 // pred_fallthru
          _
        // Predicated region
        $region65: #{tpu_custom_call.1} parent=11 // pred_check
          %p538 = pneg %p352
        $region66: #{tpu_custom_call.1} parent=11 // pred_check_branch
          %540 = sbr.rel (%p538) target = $region68
        $region67: #{tpu_custom_call.1} parent=11 // pred_region
          _
        $region68: #{tpu_custom_call.1} parent=11 // pred_fallthru
          _
        // Predicated region
        $region69: #{tpu_custom_call.1} parent=11 // pred_check
          %p541 = pneg %p373
        $region70: #{tpu_custom_call.1} parent=11 // pred_check_branch
          %543 = sbr.rel (%p541) target = $region72
        $region71: #{tpu_custom_call.1} parent=11 // pred_region
          _
        $region72: #{tpu_custom_call.1} parent=11 // pred_fallthru
          _
        // Predicated region
        $region73: #{tpu_custom_call.1} parent=11 // pred_check
          %p544 = pneg %p394
        $region74: #{tpu_custom_call.1} parent=11 // pred_check_branch
          %546 = sbr.rel (%p544) target = $region76
        $region75: #{tpu_custom_call.1} parent=11 // pred_region
          _
        $region76: #{tpu_custom_call.1} parent=11 // pred_fallthru
          _
        // Predicated region
        $region77: #{tpu_custom_call.1} parent=11 // pred_check
          %p547 = pneg %p415
        $region78: #{tpu_custom_call.1} parent=11 // pred_check_branch
          %549 = sbr.rel (%p547) target = $region80
        $region79: #{tpu_custom_call.1} parent=11 // pred_region
          _
        $region80: #{tpu_custom_call.1} parent=11 // pred_fallthru
          _
        // Predicated region
        $region81: #{tpu_custom_call.1} parent=11 // pred_check
          %p550 = pneg %p436
        $region82: #{tpu_custom_call.1} parent=11 // pred_check_branch
          %552 = sbr.rel (%p550) target = $region84
        $region83: #{tpu_custom_call.1} parent=11 // pred_region
          _
        $region84: #{tpu_custom_call.1} parent=11 // pred_fallthru
          _
      $region12: #{tpu_custom_call.1} parent=5 // pred_fallthru
        _
      %p553 = scmp.lt.s32.totalorder %s32, 2
      // Predicated region
      $region85: #{tpu_custom_call.1} parent=5 // pred_check
        %p554 = pneg %p553
      $region86: #{tpu_custom_call.1} parent=5 // pred_check_branch
        %556 = sbr.rel (%p554) target = $region88
      $region87: #{tpu_custom_call.1} parent=5 // pred_region
        // Predicated region
        $region89: #{tpu_custom_call.1} parent=87 // pred_check
          %p557 = pneg %p52
        $region90: #{tpu_custom_call.1} parent=87 // pred_check_branch
          %559 = sbr.rel (%p557) target = $region92
        $region91: #{tpu_custom_call.1} parent=87 // pred_region
          %s560 = sand.u32 %s42, 1
          %s561 = scalar_lea.sflag [#allocation3], %s560
          %s562 = sand.u32 %s42, 1
          %s563 = smul.addr %s562, 8
          %s564 = scalar_lea.vmem [#allocation2], %s563
          %566 = vsyncadd %s561, 0
          %s567 = smul.addr %s32, 8
          %s568 = scalar_lea.hbm %s0, %s567
          %s570 = sshll.u32 %s568, 4
          %s571 = int_to_ptr.hbm [resolvable:$true] %s570
          %s572 = sshll.u32 %s564, 4
          %s573 = int_to_ptr.vmem [resolvable:$true] %s572
          %575 = dma.hbm_to_vmem [thread:$0]  %s571, 128, %s573, %s561
        $region92: #{tpu_custom_call.1} parent=87 // pred_fallthru
          _
      $region88: #{tpu_custom_call.1} parent=5 // pred_fallthru
        _
      %p576 = scmp.le.s32.totalorder 1, %s32
      %p577 = scmp.lt.s32.totalorder %s32, 3
      %p578 = pnand %p576, %p577
      %p579 = pneg %p578
      // Predicated region
      $region93: #{tpu_custom_call.1} parent=5 // pred_check
        _
      $region94: #{tpu_custom_call.1} parent=5 // pred_check_branch
        %581 = sbr.rel (%p578) target = $region96
      $region95: #{tpu_custom_call.1} parent=5 // pred_region
        %s582 = ssub.s32 %s32, 1
        %s583 = sand.u32 %s45, 1
        %s584 = scalar_lea.sflag [#allocation3], %s583
        %s585 = sand.u32 %s45, 1
        %s586 = smul.addr %s585, 8
        %s587 = scalar_lea.vmem [#allocation2], %s586
        // Predicated region
        $region97: #{tpu_custom_call.1} parent=95 // pred_check
          %p588 = pneg %p58
        $region98: #{tpu_custom_call.1} parent=95 // pred_check_branch
          %590 = sbr.rel (%p588) target = $region100
        $region99: #{tpu_custom_call.1} parent=95 // pred_region
          %592 = dma.done %s584, 128
        $region100: #{tpu_custom_call.1} parent=95 // pred_fallthru
          _
        // Predicated region
        $region101: #{tpu_custom_call.1} parent=95 // pred_check
          %p593 = pneg %p205
        $region102: #{tpu_custom_call.1} parent=95 // pred_check_branch
          %595 = sbr.rel (%p593) target = $region104
        $region103: #{tpu_custom_call.1} parent=95 // pred_region
          %597 = dma.done [#allocation6], 512
        $region104: #{tpu_custom_call.1} parent=95 // pred_fallthru
          _
        // Predicated region
        $region105: #{tpu_custom_call.1} parent=95 // pred_check
          %p598 = pneg %p331
        $region106: #{tpu_custom_call.1} parent=95 // pred_check_branch
          %600 = sbr.rel (%p598) target = $region108
        $region107: #{tpu_custom_call.1} parent=95 // pred_region
          %602 = dma.done [#allocation6], 512
        $region108: #{tpu_custom_call.1} parent=95 // pred_fallthru
          _
        %s603 = sand.u32 %s45, 1
        %s604 = scalar_lea.sflag [#allocation3], %s603
        %s605 = sand.u32 %s45, 1
        %s606 = smul.addr %s605, 8
        %s607 = scalar_lea.vmem [#allocation2], %s606
        %p608 = pneg %p58
        %p609 = pneg %p55
        %p610 = pneg %p79
        %p611 = pneg %p76
        %p612 = pneg %p100
        %p613 = pneg %p97
        %p614 = pneg %p121
        %p615 = pneg %p118
        %p616 = pneg %p142
        %p617 = pneg %p139
        %p618 = pneg %p163
        %p619 = pneg %p160
        %p620 = pneg %p184
        %p621 = pneg %p181
        %p622 = pneg %p205
        %p623 = pneg %p202
        %p624 = pneg %p226
        %p625 = pneg %p223
        %p626 = pneg %p247
        %p627 = pneg %p244
        %p628 = pneg %p268
        %p629 = pneg %p265
        %p630 = pneg %p289
        %p631 = pneg %p286
        %p632 = pneg %p310
        %p633 = pneg %p307
        %p634 = pneg %p331
        %p635 = pneg %p328
        %p636 = pneg %p352
        %p637 = pneg %p349
        %p638 = pneg %p373
        %p639 = pneg %p370
        %p640 = pneg %p394
        %p641 = pneg %p391
        %p642 = pneg %p415
        %p643 = pneg %p412
        %p644 = pneg %p436
        %p645 = pneg %p433
        %p646 = pneg %p462
        %p647 = pneg %p459
        %s648 = sand.u32 %s449, 1
        %s649 = scalar_lea.sflag [#allocation4], %s648
        %s650 = sand.u32 %s449, 1
        %s651 = smul.addr %s650, 8
        %s652 = scalar_lea.vmem [#allocation8], %s651
        %v653 = vld [vmem:[%s1] sm:$0xff]
        %v654 = vld [vmem:[%s1 + $0x8] sm:$0xff]
        %v655 = vld [vmem:[%s1 + $0x10] sm:$0xff]
        %v656 = vld [vmem:[%s1 + $0x18] sm:$0xff]
        %v657 = vld [vmem:[%s3] sm:$0xff]
        %v658 = vld [vmem:[%s3 + $0x8] sm:$0xff]
        %v659 = vld [vmem:[%s3 + $0x10] sm:$0xff]
        %v660 = vld [vmem:[%s3 + $0x18] sm:$0xff]
        %v661 = vld [vmem:[%s5] sm:$0xff]
        %v662 = vld [vmem:[%s5 + $0x8] sm:$0xff]
        %v663 = vld [vmem:[%s5 + $0x10] sm:$0xff]
        %v664 = vld [vmem:[%s5 + $0x18] sm:$0xff]
        %v665 = vld [vmem:[#allocation5] sm:$0xff]
        %v666 = vld [vmem:[#allocation5 + $0x8] sm:$0xff]
        %v667 = vld [vmem:[#allocation5 + $0x10] sm:$0xff]
        %v668 = vld [vmem:[#allocation5 + $0x18] sm:$0xff]
        %v669 = vld [vmem:[#allocation7] sm:$0xff]
        %v670 = vld [vmem:[#allocation7 + $0x8] sm:$0xff]
        %v671 = vld [vmem:[#allocation7 + $0x10] sm:$0xff]
        %v672 = vld [vmem:[#allocation7 + $0x18] sm:$0xff]
        %v673 = vld [vmem:[%s15] sm:$0xff]
        %v674 = vld [vmem:[%s15 + $0x8] sm:$0xff]
        %v675 = vld [vmem:[%s15 + $0x10] sm:$0xff]
        %v676 = vld [vmem:[%s15 + $0x18] sm:$0xff]
        %v677 = vld [vmem:[%s15 + $0x20] sm:$0xff]
        %v678 = vld [vmem:[%s15 + $0x28] sm:$0xff]
        %v679 = vld [vmem:[%s15 + $0x30] sm:$0xff]
        %v680 = vld [vmem:[%s15 + $0x38] sm:$0xff]
        %v681 = vld [vmem:[%s2] sm:$0x1]
        %v682 = vld [vmem:[%s4] sm:$0x1]
        %v683 = vld [vmem:[%s6] sm:$0x1]
        %v684 = vld [vmem:[%s8] sm:$0x1]
        %v685 = vld [vmem:[%s14] sm:$0x1]
        %v686 = vld [vmem:[%s16] sm:$0x1]
        %v687 = vld [vmem:[%s9] sm:$0x1]
        %v688 = vld [vmem:[%s10] sm:$0x1]
        %v689 = vld [vmem:[%s11] sm:$0x1]
        %v690 = vld [vmem:[%s12] sm:$0x1]
        %v691 = vld [vmem:[%s17] sm:$0x1]
        %v692 = vld [vmem:[%s18] sm:$0x1]
        %v693 = vld [vmem:[%s587] sm:$0xff]
        loop: start=0, step=1, limit=6
        $region109: #{tpu_custom_call.1} parent=95 // loop_pre_header
          _
        $region110: #{tpu_custom_call.1} parent=95 // loop_header
          %s695 = sphi 0, %s699
          %p696 = scmp.ge.s32.totalorder %s695, 6
          %v700 = vphi %v693, %v1280
        $region111: #{tpu_custom_call.1} parent=95 // loop_header_branch
          %698 = sbr.rel (%p696) target = $region115
        $region112: #{tpu_custom_call.1} parent=95 // loop_body
          %v702 = vperm.slane %v681, 0
          %vm704 = vcmask 261120
          %v706 = vsel %vm704, %v700, 0
          %708 = vmatpush.msra.mxu0 0.0
          %709 = vmatpush.msra.mxu0 0.0
          %710 = vmatpush.msra.mxu0 0.0
          %711 = vmatpush.msra.mxu0 0.0
          %712 = vmatpush.msra.mxu0 0.0
          %713 = vmatpush.msra.mxu0 0.0
          %714 = vmatpush.msra.mxu0 0.0
          %715 = vmatpush.msra.mxu0 0.0
          %716 = vmatpush.msra.mxu0 0.0
          %717 = vmatpush.msra.mxu0 0.0
          %718 = vmatpush.msra.mxu0 0.0
          %719 = vmatpush.msra.mxu0 0.0
          %720 = vmatpush.msra.mxu0 %v656
          %721 = vmatpush.msra.mxu0 %v655
          %722 = vmatpush.msra.mxu0 %v654
          %723 = vmatpush.msra.mxu0 %v653
          %724 = vmatmul.f32.gmra.mxu0 %v706
          %v725 = vpop.f32.mrf.mxu0
          %v726 = vadd.f32 %v702, %v725
          %727 = vdwg.mxu0
          %v729 = vperm.slane %v682, 0
          %731 = vmatpush.msra.mxu0 0.0
          %732 = vmatpush.msra.mxu0 0.0
          %733 = vmatpush.msra.mxu0 0.0
          %734 = vmatpush.msra.mxu0 0.0
          %735 = vmatpush.msra.mxu0 0.0
          %736 = vmatpush.msra.mxu0 0.0
          %737 = vmatpush.msra.mxu0 0.0
          %738 = vmatpush.msra.mxu0 0.0
          %739 = vmatpush.msra.mxu0 0.0
          %740 = vmatpush.msra.mxu0 0.0
          %741 = vmatpush.msra.mxu0 0.0
          %742 = vmatpush.msra.mxu0 0.0
          %743 = vmatpush.msra.mxu0 %v660
          %744 = vmatpush.msra.mxu0 %v659
          %745 = vmatpush.msra.mxu0 %v658
          %746 = vmatpush.msra.mxu0 %v657
          %747 = vmatmul.f32.gmra.mxu0 %v706
          %v748 = vpop.f32.mrf.mxu0
          %v749 = vadd.f32 %v729, %v748
          %750 = vdwg.mxu0
          %v752 = vperm.slane %v683, 0
          %754 = vmatpush.msra.mxu0 0.0
          %755 = vmatpush.msra.mxu0 0.0
          %756 = vmatpush.msra.mxu0 0.0
          %757 = vmatpush.msra.mxu0 0.0
          %758 = vmatpush.msra.mxu0 0.0
          %759 = vmatpush.msra.mxu0 0.0
          %760 = vmatpush.msra.mxu0 0.0
          %761 = vmatpush.msra.mxu0 0.0
          %762 = vmatpush.msra.mxu0 0.0
          %763 = vmatpush.msra.mxu0 0.0
          %764 = vmatpush.msra.mxu0 0.0
          %765 = vmatpush.msra.mxu0 0.0
          %766 = vmatpush.msra.mxu0 %v664
          %767 = vmatpush.msra.mxu0 %v663
          %768 = vmatpush.msra.mxu0 %v662
          %769 = vmatpush.msra.mxu0 %v661
          %770 = vmatmul.f32.gmra.mxu0 %v706
          %v771 = vpop.f32.mrf.mxu0
          %v772 = vadd.f32 %v752, %v771
          %773 = vdwg.mxu0
          %vm774 = vcmask 64512
          %v776 = vsel %vm774, %v726, 0
          %v779 = vsel %vm774, %v749, 0
          %781 = vmatpush.xpose.msra.mxu0 0.0
          %782 = vmatpush.xpose.msra.mxu0 0.0
          %783 = vmatpush.xpose.msra.mxu0 0.0
          %784 = vmatpush.xpose.msra.mxu0 0.0
          %785 = vmatpush.xpose.msra.mxu0 0.0
          %786 = vmatpush.xpose.msra.mxu0 0.0
          %787 = vmatpush.xpose.msra.mxu0 0.0
          %788 = vmatpush.xpose.msra.mxu0 0.0
          %789 = vmatpush.xpose.msra.mxu0 0.0
          %790 = vmatpush.xpose.msra.mxu0 0.0
          %791 = vmatpush.xpose.msra.mxu0 0.0
          %792 = vmatpush.xpose.msra.mxu0 0.0
          %793 = vmatpush.xpose.msra.mxu0 0.0
          %794 = vmatpush.xpose.msra.mxu0 0.0
          %795 = vmatpush.xpose.msra.mxu0 0.0
          %796 = vmatpush.xpose.msra.mxu0 %v779
          %797 = vmatmul.f32.gmra.mxu0 %v776
          %v798 = vpop.f32.mrf.mxu0
          %v799 = vadd.f32 0.0, %v798
          %800 = vdwg.mxu0
          %v801 = vsel %vm774, %v799, -inf
          %802 = vmax.xlane.f32.xlu0 %v801
          %v803 = vpop.xlane.xlu0 %802
          %v804 = vsub.f32 %v799, %v803
          %v805 = vmul.f32 %v804, 1.442695
          %v806 = vpow.pop %v805
          %v807 = vsel %vm774, %v806, 0.0
          %808 = vadd.xlane.f32.xlu0 %v807
          %v809 = vpop.xlane.xlu0 %808
          %v810 = vrcp.pop %v809
          %v811 = vmul.f32 %v809, %v810
          %v812 = vsub.f32 1.0, %v811
          %v813 = vmul.f32 %v810, %v812
          %v814 = vadd.f32 %v810, %v813
          %vm815 = vweird.f32 %v809
          %vm816 = vweird.f32 %v810
          %vm817 = vmor %vm815, %vm816
          %v818 = vsel %vm817, %v810, %v814
          %v819 = vand.u32 2147483647, %v809
          %vm820 = vcmp.eq.f32.partialorder %v819, 8.507059e+37
          %v821 = vand.u32 %v809, 2147483648
          %v822 = vor.u32 1.1754944e-38, %v821
          %v823 = vsel %vm820, %v822, %v818
          %v824 = vmul.f32 %v806, %v823
          %v826 = vsel %vm774, %v824, 0
          %828 = vmatpush.msra.mxu0 0.0
          %829 = vmatpush.msra.mxu0 0.0
          %830 = vmatpush.msra.mxu0 0.0
          %831 = vmatpush.msra.mxu0 0.0
          %832 = vmatpush.msra.mxu0 0.0
          %833 = vmatpush.msra.mxu0 0.0
          %834 = vmatpush.msra.mxu0 0.0
          %835 = vmatpush.msra.mxu0 0.0
          %836 = vmatpush.msra.mxu0 0.0
          %837 = vmatpush.msra.mxu0 0.0
          %838 = vmatpush.msra.mxu0 0.0
          %839 = vmatpush.msra.mxu0 0.0
          %840 = vmatpush.msra.mxu0 0.0
          %841 = vmatpush.msra.mxu0 0.0
          %842 = vmatpush.msra.mxu0 0.0
          %843 = vmatpush.msra.mxu0 %v772
          %844 = vmatmul.f32.gmra.mxu0 %v826
          %v845 = vpop.f32.mrf.mxu0
          %v846 = vadd.f32 0.0, %v845
          %847 = vdwg.mxu0
          %848 = vrot.lane.b32.xlu0 %v726, 120
          %v849 = vpop.permute.xlu0 %848
          %850 = vrot.lane.b32.xlu0 %v749, 120
          %v851 = vpop.permute.xlu0 %850
          %v852 = vsel %vm774, %v849, 0
          %v854 = vsel %vm774, %v851, 0
          %856 = vmatpush.xpose.msra.mxu0 0.0
          %857 = vmatpush.xpose.msra.mxu0 0.0
          %858 = vmatpush.xpose.msra.mxu0 0.0
          %859 = vmatpush.xpose.msra.mxu0 0.0
          %860 = vmatpush.xpose.msra.mxu0 0.0
          %861 = vmatpush.xpose.msra.mxu0 0.0
          %862 = vmatpush.xpose.msra.mxu0 0.0
          %863 = vmatpush.xpose.msra.mxu0 0.0
          %864 = vmatpush.xpose.msra.mxu0 0.0
          %865 = vmatpush.xpose.msra.mxu0 0.0
          %866 = vmatpush.xpose.msra.mxu0 0.0
          %867 = vmatpush.xpose.msra.mxu0 0.0
          %868 = vmatpush.xpose.msra.mxu0 0.0
          %869 = vmatpush.xpose.msra.mxu0 0.0
          %870 = vmatpush.xpose.msra.mxu0 0.0
          %871 = vmatpush.xpose.msra.mxu0 %v854
          %872 = vmatmul.f32.gmra.mxu0 %v852
          %v873 = vpop.f32.mrf.mxu0
          %v874 = vadd.f32 0.0, %v873
          %875 = vdwg.mxu0
          %v876 = vsel %vm774, %v874, -inf
          %877 = vmax.xlane.f32.xlu0 %v876
          %v878 = vpop.xlane.xlu0 %877
          %v879 = vsub.f32 %v874, %v878
          %v880 = vmul.f32 %v879, 1.442695
          %v881 = vpow.pop %v880
          %v882 = vsel %vm774, %v881, 0.0
          %883 = vadd.xlane.f32.xlu0 %v882
          %v884 = vpop.xlane.xlu0 %883
          %v885 = vrcp.pop %v884
          %v886 = vmul.f32 %v884, %v885
          %v887 = vsub.f32 1.0, %v886
          %v888 = vmul.f32 %v885, %v887
          %v889 = vadd.f32 %v885, %v888
          %vm890 = vweird.f32 %v884
          %vm891 = vweird.f32 %v885
          %vm892 = vmor %vm890, %vm891
          %v893 = vsel %vm892, %v885, %v889
          %v894 = vand.u32 2147483647, %v884
          %vm895 = vcmp.eq.f32.partialorder %v894, 8.507059e+37
          %v896 = vand.u32 %v884, 2147483648
          %v897 = vor.u32 1.1754944e-38, %v896
          %v898 = vsel %vm895, %v897, %v893
          %v899 = vmul.f32 %v881, %v898
          %901 = vrot.lane.b32.xlu0 %v772, 120
          %v902 = vpop.permute.xlu0 %901
          %v905 = vsel %vm774, %v899, 0
          %907 = vmatpush.msra.mxu0 0.0
          %908 = vmatpush.msra.mxu0 0.0
          %909 = vmatpush.msra.mxu0 0.0
          %910 = vmatpush.msra.mxu0 0.0
          %911 = vmatpush.msra.mxu0 0.0
          %912 = vmatpush.msra.mxu0 0.0
          %913 = vmatpush.msra.mxu0 0.0
          %914 = vmatpush.msra.mxu0 0.0
          %915 = vmatpush.msra.mxu0 0.0
          %916 = vmatpush.msra.mxu0 0.0
          %917 = vmatpush.msra.mxu0 0.0
          %918 = vmatpush.msra.mxu0 0.0
          %919 = vmatpush.msra.mxu0 0.0
          %920 = vmatpush.msra.mxu0 0.0
          %921 = vmatpush.msra.mxu0 0.0
          %922 = vmatpush.msra.mxu0 %v902
          %923 = vmatmul.f32.gmra.mxu0 %v905
          %v924 = vpop.f32.mrf.mxu0
          %v925 = vadd.f32 0.0, %v924
          %926 = vdwg.mxu0
          %927 = vrot.lane.b32.xlu0 %v726, 112
          %v928 = vpop.permute.xlu0 %927
          %929 = vrot.lane.b32.xlu0 %v749, 112
          %v930 = vpop.permute.xlu0 %929
          %v931 = vsel %vm774, %v928, 0
          %v933 = vsel %vm774, %v930, 0
          %935 = vmatpush.xpose.msra.mxu0 0.0
          %936 = vmatpush.xpose.msra.mxu0 0.0
          %937 = vmatpush.xpose.msra.mxu0 0.0
          %938 = vmatpush.xpose.msra.mxu0 0.0
          %939 = vmatpush.xpose.msra.mxu0 0.0
          %940 = vmatpush.xpose.msra.mxu0 0.0
          %941 = vmatpush.xpose.msra.mxu0 0.0
          %942 = vmatpush.xpose.msra.mxu0 0.0
          %943 = vmatpush.xpose.msra.mxu0 0.0
          %944 = vmatpush.xpose.msra.mxu0 0.0
          %945 = vmatpush.xpose.msra.mxu0 0.0
          %946 = vmatpush.xpose.msra.mxu0 0.0
          %947 = vmatpush.xpose.msra.mxu0 0.0
          %948 = vmatpush.xpose.msra.mxu0 0.0
          %949 = vmatpush.xpose.msra.mxu0 0.0
          %950 = vmatpush.xpose.msra.mxu0 %v933
          %951 = vmatmul.f32.gmra.mxu0 %v931
          %v952 = vpop.f32.mrf.mxu0
          %v953 = vadd.f32 0.0, %v952
          %954 = vdwg.mxu0
          %v955 = vsel %vm774, %v953, -inf
          %956 = vmax.xlane.f32.xlu0 %v955
          %v957 = vpop.xlane.xlu0 %956
          %v958 = vsub.f32 %v953, %v957
          %v959 = vmul.f32 %v958, 1.442695
          %v960 = vpow.pop %v959
          %v961 = vsel %vm774, %v960, 0.0
          %962 = vadd.xlane.f32.xlu0 %v961
          %v963 = vpop.xlane.xlu0 %962
          %v964 = vrcp.pop %v963
          %v965 = vmul.f32 %v963, %v964
          %v966 = vsub.f32 1.0, %v965
          %v967 = vmul.f32 %v964, %v966
          %v968 = vadd.f32 %v964, %v967
          %vm969 = vweird.f32 %v963
          %vm970 = vweird.f32 %v964
          %vm971 = vmor %vm969, %vm970
          %v972 = vsel %vm971, %v964, %v968
          %v973 = vand.u32 2147483647, %v963
          %vm974 = vcmp.eq.f32.partialorder %v973, 8.507059e+37
          %v975 = vand.u32 %v963, 2147483648
          %v976 = vor.u32 1.1754944e-38, %v975
          %v977 = vsel %vm974, %v976, %v972
          %v978 = vmul.f32 %v960, %v977
          %979 = vrot.lane.b32.xlu0 %v772, 112
          %v980 = vpop.permute.xlu0 %979
          %v983 = vsel %vm774, %v978, 0
          %985 = vmatpush.msra.mxu0 0.0
          %986 = vmatpush.msra.mxu0 0.0
          %987 = vmatpush.msra.mxu0 0.0
          %988 = vmatpush.msra.mxu0 0.0
          %989 = vmatpush.msra.mxu0 0.0
          %990 = vmatpush.msra.mxu0 0.0
          %991 = vmatpush.msra.mxu0 0.0
          %992 = vmatpush.msra.mxu0 0.0
          %993 = vmatpush.msra.mxu0 0.0
          %994 = vmatpush.msra.mxu0 0.0
          %995 = vmatpush.msra.mxu0 0.0
          %996 = vmatpush.msra.mxu0 0.0
          %997 = vmatpush.msra.mxu0 0.0
          %998 = vmatpush.msra.mxu0 0.0
          %999 = vmatpush.msra.mxu0 0.0
          %1000 = vmatpush.msra.mxu0 %v980
          %1001 = vmatmul.f32.gmra.mxu0 %v983
          %v1002 = vpop.f32.mrf.mxu0
          %v1003 = vadd.f32 0.0, %v1002
          %1004 = vdwg.mxu0
          %1005 = vrot.lane.b32.xlu0 %v726, 104
          %v1006 = vpop.permute.xlu0 %1005
          %1007 = vrot.lane.b32.xlu0 %v749, 104
          %v1008 = vpop.permute.xlu0 %1007
          %v1009 = vsel %vm774, %v1006, 0
          %v1011 = vsel %vm774, %v1008, 0
          %1013 = vmatpush.xpose.msra.mxu0 0.0
          %1014 = vmatpush.xpose.msra.mxu0 0.0
          %1015 = vmatpush.xpose.msra.mxu0 0.0
          %1016 = vmatpush.xpose.msra.mxu0 0.0
          %1017 = vmatpush.xpose.msra.mxu0 0.0
          %1018 = vmatpush.xpose.msra.mxu0 0.0
          %1019 = vmatpush.xpose.msra.mxu0 0.0
          %1020 = vmatpush.xpose.msra.mxu0 0.0
          %1021 = vmatpush.xpose.msra.mxu0 0.0
          %1022 = vmatpush.xpose.msra.mxu0 0.0
          %1023 = vmatpush.xpose.msra.mxu0 0.0
          %1024 = vmatpush.xpose.msra.mxu0 0.0
          %1025 = vmatpush.xpose.msra.mxu0 0.0
          %1026 = vmatpush.xpose.msra.mxu0 0.0
          %1027 = vmatpush.xpose.msra.mxu0 0.0
          %1028 = vmatpush.xpose.msra.mxu0 %v1011
          %1029 = vmatmul.f32.gmra.mxu0 %v1009
          %v1030 = vpop.f32.mrf.mxu0
          %v1031 = vadd.f32 0.0, %v1030
          %1032 = vdwg.mxu0
          %v1033 = vsel %vm774, %v1031, -inf
          %1034 = vmax.xlane.f32.xlu0 %v1033
          %v1035 = vpop.xlane.xlu0 %1034
          %v1036 = vsub.f32 %v1031, %v1035
          %v1037 = vmul.f32 %v1036, 1.442695
          %v1038 = vpow.pop %v1037
          %v1039 = vsel %vm774, %v1038, 0.0
          %1040 = vadd.xlane.f32.xlu0 %v1039
          %v1041 = vpop.xlane.xlu0 %1040
          %v1042 = vrcp.pop %v1041
          %v1043 = vmul.f32 %v1041, %v1042
          %v1044 = vsub.f32 1.0, %v1043
          %v1045 = vmul.f32 %v1042, %v1044
          %v1046 = vadd.f32 %v1042, %v1045
          %vm1047 = vweird.f32 %v1041
          %vm1048 = vweird.f32 %v1042
          %vm1049 = vmor %vm1047, %vm1048
          %v1050 = vsel %vm1049, %v1042, %v1046
          %v1051 = vand.u32 2147483647, %v1041
          %vm1052 = vcmp.eq.f32.partialorder %v1051, 8.507059e+37
          %v1053 = vand.u32 %v1041, 2147483648
          %v1054 = vor.u32 1.1754944e-38, %v1053
          %v1055 = vsel %vm1052, %v1054, %v1050
          %v1056 = vmul.f32 %v1038, %v1055
          %1057 = vrot.lane.b32.xlu0 %v772, 104
          %v1058 = vpop.permute.xlu0 %1057
          %v1061 = vsel %vm774, %v1056, 0
          %1063 = vmatpush.msra.mxu0 0.0
          %1064 = vmatpush.msra.mxu0 0.0
          %1065 = vmatpush.msra.mxu0 0.0
          %1066 = vmatpush.msra.mxu0 0.0
          %1067 = vmatpush.msra.mxu0 0.0
          %1068 = vmatpush.msra.mxu0 0.0
          %1069 = vmatpush.msra.mxu0 0.0
          %1070 = vmatpush.msra.mxu0 0.0
          %1071 = vmatpush.msra.mxu0 0.0
          %1072 = vmatpush.msra.mxu0 0.0
          %1073 = vmatpush.msra.mxu0 0.0
          %1074 = vmatpush.msra.mxu0 0.0
          %1075 = vmatpush.msra.mxu0 0.0
          %1076 = vmatpush.msra.mxu0 0.0
          %1077 = vmatpush.msra.mxu0 0.0
          %1078 = vmatpush.msra.mxu0 %v1058
          %1079 = vmatmul.f32.gmra.mxu0 %v1061
          %v1080 = vpop.f32.mrf.mxu0
          %v1081 = vadd.f32 0.0, %v1080
          %1082 = vdwg.mxu0
          %1084 = vrot.lane.b32.xlu0 %v925, 8
          %v1085 = vpop.permute.xlu0 %1084
          %1088 = vrot.lane.b32.xlu0 %v1003, 16
          %v1089 = vpop.permute.xlu0 %1088
          %1092 = vrot.lane.b32.xlu0 %v1081, 24
          %v1093 = vpop.permute.xlu0 %1092
          %v1095 = vsel %vm774, %v846, %v1085
          %vm1096 = vcmask 130048
          %v1097 = vsel %vm1096, %v1095, %v1089
          %vm1098 = vcmask 195584
          %v1099 = vsel %vm1098, %v1097, %v1093
          %v1101 = vperm.slane %v684, 0
          %v1104 = vsel %vm704, %v1099, 0
          %1106 = vmatpush.msra.mxu0 0.0
          %1107 = vmatpush.msra.mxu0 0.0
          %1108 = vmatpush.msra.mxu0 0.0
          %1109 = vmatpush.msra.mxu0 0.0
          %1110 = vmatpush.msra.mxu0 0.0
          %1111 = vmatpush.msra.mxu0 0.0
          %1112 = vmatpush.msra.mxu0 0.0
          %1113 = vmatpush.msra.mxu0 0.0
          %1114 = vmatpush.msra.mxu0 0.0
          %1115 = vmatpush.msra.mxu0 0.0
          %1116 = vmatpush.msra.mxu0 0.0
          %1117 = vmatpush.msra.mxu0 0.0
          %1118 = vmatpush.msra.mxu0 %v668
          %1119 = vmatpush.msra.mxu0 %v667
          %1120 = vmatpush.msra.mxu0 %v666
          %1121 = vmatpush.msra.mxu0 %v665
          %1122 = vmatmul.f32.gmra.mxu0 %v1104
          %v1123 = vpop.f32.mrf.mxu0
          %v1124 = vadd.f32 %v1101, %v1123
          %1125 = vdwg.mxu0
          %v1126 = vadd.f32 %v1124, %v700
          %v1127 = vsel %vm704, %v1126, 0.0
          %1128 = vadd.xlane.f32.xlu0 %v1127
          %v1129 = vpop.xlane.xlu0 %1128
          %v1130 = vrcp.pop 32.0
          %v1131 = vmul.f32 32.0, %v1130
          %v1132 = vsub.f32 1.0, %v1131
          %v1133 = vmul.f32 %v1130, %v1132
          %v1134 = vadd.f32 %v1130, %v1133
          %vm1135 = vweird.f32 %v1130
          %v1136 = vsel %vm1135, %v1130, %v1134
          %v1137 = vmul.f32 %v1129, %v1136
          %v1138 = vsub.f32 %v1126, %v1137
          %v1139 = vmul.f32 %v1138, %v1138
          %v1140 = vsel %vm704, %v1139, 0.0
          %1141 = vadd.xlane.f32.xlu0 %v1140
          %v1142 = vpop.xlane.xlu0 %1141
          %v1143 = vmul.f32 %v1142, %v1136
          %v1144 = vadd.f32 %v1143, 1e-05
          %v1145 = vrsqrt.pop %v1144
          %v1146 = vmul.f32 %v1145, %v1144
          %v1147 = vmul.f32 %v1146, %v1145
          %v1148 = vmul.f32 0.5, %v1147
          %v1149 = vsub.f32 1.5, %v1148
          %v1150 = vmul.f32 %v1145, %v1149
          %vm1151 = vweird.f32 %v1144
          %vm1152 = vweird.f32 %v1145
          %vm1153 = vmor %vm1151, %vm1152
          %v1154 = vsel %vm1153, %v1145, %v1150
          %v1155 = vmul.f32 %v1138, %v1154
          %v1157 = vperm.slane %v687, 0
          %v1159 = vmul.f32 %v1155, %v1157
          %v1161 = vperm.slane %v688, 0
          %v1163 = vadd.f32 %v1159, %v1161
          %v1164 = vmax.f32 %v1163, 0.0
          %v1165 = vsel %vm704, %v1164, 0.0
          %1166 = vadd.xlane.f32.xlu0 %v1165
          %v1167 = vpop.xlane.xlu0 %1166
          %v1168 = vmul.f32 %v1167, %v1136
          %v1169 = vsub.f32 %v1164, %v1168
          %v1170 = vmul.f32 %v1169, %v1169
          %v1171 = vsel %vm704, %v1170, 0.0
          %1172 = vadd.xlane.f32.xlu0 %v1171
          %v1173 = vpop.xlane.xlu0 %1172
          %v1174 = vmul.f32 %v1173, %v1136
          %v1175 = vadd.f32 %v1174, 1e-06
          %v1176 = vrsqrt.pop %v1175
          %v1177 = vmul.f32 %v1176, %v1175
          %v1178 = vmul.f32 %v1177, %v1176
          %v1179 = vmul.f32 0.5, %v1178
          %v1180 = vsub.f32 1.5, %v1179
          %v1181 = vmul.f32 %v1176, %v1180
          %vm1182 = vweird.f32 %v1175
          %vm1183 = vweird.f32 %v1176
          %vm1184 = vmor %vm1182, %vm1183
          %v1185 = vsel %vm1184, %v1176, %v1181
          %v1186 = vmul.f32 %v1169, %v1185
          %v1188 = vperm.slane %v689, 0
          %v1190 = vmul.f32 %v1186, %v1188
          %v1192 = vperm.slane %v690, 0
          %v1194 = vadd.f32 %v1190, %v1192
          %v1196 = vperm.slane %v685, 0
          %v1199 = vsel %vm704, %v1194, 0
          %1201 = vmatpush.msra.mxu0 0.0
          %1202 = vmatpush.msra.mxu0 0.0
          %1203 = vmatpush.msra.mxu0 0.0
          %1204 = vmatpush.msra.mxu0 0.0
          %1205 = vmatpush.msra.mxu0 0.0
          %1206 = vmatpush.msra.mxu0 0.0
          %1207 = vmatpush.msra.mxu0 0.0
          %1208 = vmatpush.msra.mxu0 0.0
          %1209 = vmatpush.msra.mxu0 0.0
          %1210 = vmatpush.msra.mxu0 0.0
          %1211 = vmatpush.msra.mxu0 0.0
          %1212 = vmatpush.msra.mxu0 0.0
          %1213 = vmatpush.msra.mxu0 %v672
          %1214 = vmatpush.msra.mxu0 %v671
          %1215 = vmatpush.msra.mxu0 %v670
          %1216 = vmatpush.msra.mxu0 %v669
          %1217 = vmatmul.f32.gmra.mxu0 %v1199
          %v1218 = vpop.f32.mrf.mxu0
          %v1219 = vadd.f32 %v1196, %v1218
          %1220 = vdwg.mxu0
          %v1221 = vmax.f32 %v1219, 0.0
          %v1223 = vperm.slane %v686, 0
          %vm1225 = vcmask 523264
          %v1227 = vsel %vm1225, %v1221, 0
          %1229 = vmatpush.msra.mxu0 0.0
          %1230 = vmatpush.msra.mxu0 0.0
          %1231 = vmatpush.msra.mxu0 0.0
          %1232 = vmatpush.msra.mxu0 0.0
          %1233 = vmatpush.msra.mxu0 0.0
          %1234 = vmatpush.msra.mxu0 0.0
          %1235 = vmatpush.msra.mxu0 0.0
          %1236 = vmatpush.msra.mxu0 0.0
          %1237 = vmatpush.msra.mxu0 %v680
          %1238 = vmatpush.msra.mxu0 %v679
          %1239 = vmatpush.msra.mxu0 %v678
          %1240 = vmatpush.msra.mxu0 %v677
          %1241 = vmatpush.msra.mxu0 %v676
          %1242 = vmatpush.msra.mxu0 %v675
          %1243 = vmatpush.msra.mxu0 %v674
          %1244 = vmatpush.msra.mxu0 %v673
          %1245 = vmatmul.f32.gmra.mxu0 %v1227
          %v1246 = vpop.f32.mrf.mxu0
          %v1247 = vadd.f32 %v1223, %v1246
          %1248 = vdwg.mxu0
          %v1249 = vadd.f32 %v1247, %v1164
          %v1250 = vsel %vm704, %v1249, 0.0
          %1251 = vadd.xlane.f32.xlu0 %v1250
          %v1252 = vpop.xlane.xlu0 %1251
          %v1253 = vmul.f32 %v1252, %v1136
          %v1254 = vsub.f32 %v1249, %v1253
          %v1255 = vmul.f32 %v1254, %v1254
          %v1256 = vsel %vm704, %v1255, 0.0
          %1257 = vadd.xlane.f32.xlu0 %v1256
          %v1258 = vpop.xlane.xlu0 %1257
          %v1259 = vmul.f32 %v1258, %v1136
          %v1260 = vadd.f32 %v1259, 1e-05
          %v1261 = vrsqrt.pop %v1260
          %v1262 = vmul.f32 %v1261, %v1260
          %v1263 = vmul.f32 %v1262, %v1261
          %v1264 = vmul.f32 0.5, %v1263
          %v1265 = vsub.f32 1.5, %v1264
          %v1266 = vmul.f32 %v1261, %v1265
          %vm1267 = vweird.f32 %v1260
          %vm1268 = vweird.f32 %v1261
          %vm1269 = vmor %vm1267, %vm1268
          %v1270 = vsel %vm1269, %v1261, %v1266
          %v1271 = vmul.f32 %v1254, %v1270
          %v1273 = vperm.slane %v691, 0
          %v1275 = vmul.f32 %v1271, %v1273
          %v1277 = vperm.slane %v692, 0
          %v1279 = vadd.f32 %v1275, %v1277
          %v1280 = vmax.f32 %v1279, 0.0
        $region113: #{tpu_custom_call.1} parent=95 // loop_footer
          %s699 = sadd.s32 1, %s695
        $region114: #{tpu_custom_call.1} parent=95 // loop_footer_branch
          %694 = sbr.rel target = $region110
        $region115: #{tpu_custom_call.1} parent=95 // loop_exit
          _
        %vm1281 = vcmask 261120
        %1282 = vst.msk [vmem:[%s652] sm:$0xff] %vm1281, %v700
        %s1283 = sand.u32 %s449, 1
        %s1284 = scalar_lea.sflag [#allocation4], %s1283
        %s1285 = sand.u32 %s449, 1
        %s1286 = smul.addr %s1285, 8
        %s1287 = scalar_lea.vmem [#allocation8], %s1286
        // Predicated region
        $region116: #{tpu_custom_call.1} parent=95 // pred_check
          %p1288 = pneg %p459
        $region117: #{tpu_custom_call.1} parent=95 // pred_check_branch
          %1290 = sbr.rel (%p1288) target = $region119
        $region118: #{tpu_custom_call.1} parent=95 // pred_region
          %1292 = vsyncadd %s1284, 0
          %s1293 = smul.addr %s37, 8
          %s1294 = scalar_lea.hbm %s19, %s1293
          %s1296 = sshll.u32 %s1287, 4
          %s1297 = int_to_ptr.vmem [resolvable:$true] %s1296
          %s1298 = sshll.u32 %s1294, 4
          %s1299 = int_to_ptr.hbm [resolvable:$true] %s1298
          %1301 = dma.vmem_to_hbm [thread:$0]  %s1297, 128, %s1299, %s1284
        $region119: #{tpu_custom_call.1} parent=95 // pred_fallthru
          _
      $region96: #{tpu_custom_call.1} parent=5 // pred_fallthru
        _
      %p1302 = scmp.le.s32.totalorder 2, %s32
      // Predicated region
      $region120: #{tpu_custom_call.1} parent=5 // pred_check
        %p1303 = pneg %p1302
      $region121: #{tpu_custom_call.1} parent=5 // pred_check_branch
        %1305 = sbr.rel (%p1303) target = $region123
      $region122: #{tpu_custom_call.1} parent=5 // pred_region
        %s1306 = ssub.s32 %s32, 2
        // Predicated region
        $region124: #{tpu_custom_call.1} parent=122 // pred_check
          %p1307 = pneg %p465
        $region125: #{tpu_custom_call.1} parent=122 // pred_check_branch
          %1309 = sbr.rel (%p1307) target = $region127
        $region126: #{tpu_custom_call.1} parent=122 // pred_region
          %s1310 = sand.u32 %s450, 1
          %s1311 = scalar_lea.sflag [#allocation4], %s1310
          %s1312 = sand.u32 %s450, 1
          %s1313 = smul.addr %s1312, 8
          %s1314 = scalar_lea.vmem [#allocation8], %s1313
          %1316 = dma.done %s1311, 128
        $region127: #{tpu_custom_call.1} parent=122 // pred_fallthru
          _
      $region123: #{tpu_custom_call.1} parent=5 // pred_fallthru
        _
    $region6: #{tpu_custom_call.1} parent=1 // loop_footer
      %s36 = sadd.s32 1, %s32
    $region7: #{tpu_custom_call.1} parent=1 // loop_footer_branch
      %31 = sbr.rel target = $region3
    $region8: #{tpu_custom_call.1} parent=1 // loop_exit
      _
    %1317 = vsyncpa [#allocation3], 1
    %s1318 = scalar_lea.sflag [#allocation3], 1
    %1319 = vsyncpa %s1318, 1
    %1320 = vsyncpa [#allocation6], 1
    %1321 = vsyncpa [#allocation4], 1
    %s1322 = scalar_lea.sflag [#allocation4], 1
    %1323 = vsyncpa %s1322, 1

</llo_original>
